<compile_context>
chip_gen: v7x
topology: tpu7x:2x2x1
jax: 0.10.0
libtpu: 0.0.40
codegen_flags: <defaults>
</compile_context>

<pallas_src>
import functools

import jax
import jax.numpy as jnp
import numpy as np
from jax.experimental import pallas as pl
from jax.experimental.pallas import tpu as pltpu

EPS = 1e-5
K = 7          # conv kernel size
PAD = 3        # conv padding (same-size output)


def _spatial_enhancement_kernel(b_ref, wmask_ref, x_ref, o_ref, *, H, W):
    # b_ref     : (1,)       f32 SMEM  conv bias
    # wmask_ref : (K*K, HW)  f32 VMEM  w[dy,dx] * row_mask[dy] * col_mask[dx]
    # x_ref/o_ref: (Bt, C, HW) VMEM    Bt batches packed per grid step
    HW = H * W
    Bt = x_ref.shape[0]

    xf = x_ref[...].astype(jnp.float32)                     # (Bt, C, HW)

    # context = sqrt(sum_c x^2 + eps); Bt rides the sublane dim so the conv below
    # amortises its rolls / multiplies over Bt batches at identical per-step cost.
    ctx = jnp.sqrt(jnp.sum(xf * xf, axis=1) + EPS)           # (Bt, HW)

    # 7x7 zero-padded cross-correlation, fully unrolled.  Tap (dy, dx) reads
    # ctx[i+dy-PAD, j+dx-PAD]; in the flat layout that is a rotation by
    # s = (dy-PAD)*W + (dx-PAD); out-of-image / wrapped lanes are zeroed by wmask.
    acc = jnp.full((Bt, HW), b_ref[0], dtype=jnp.float32)
    if W % 128 == 0:
        # Decompose the shift: 7 reusable XLU lane rotations (by dx) + cheap
        # vreg-granular rolls by (dy-PAD)*W (multiples of 128 lanes).
        ctx_dx = [ctx if dx == PAD else
                  pltpu.roll(ctx, shift=(PAD - dx) % HW, axis=1) for dx in range(K)]
        for dy in range(K):
            oy = dy - PAD
            for dx in range(K):
                tap = dy * K + dx
                base = ctx_dx[dx]
                shifted = base if oy == 0 else pltpu.roll(
                    base, shift=(-oy * W) % HW, axis=1)
                acc = acc + shifted * wmask_ref[tap:tap + 1, :]
    else:
        for dy in range(K):
            for dx in range(K):
                s = (dy - PAD) * W + (dx - PAD)
                tap = dy * K + dx
                shifted = ctx if s == 0 else pltpu.roll(ctx, shift=(-s) % HW, axis=1)
                acc = acc + shifted * wmask_ref[tap:tap + 1, :]

    attn = jax.nn.sigmoid(acc)                               # (Bt, HW)
    # Final multiply in f32 on the already-materialised xf (accurate, v5e-friendly).
    o_ref[...] = (xf * attn[:, None, :]).astype(o_ref.dtype)


def _tap_masks(H, W):
    """0/1 validity mask per (dy,dx) tap of the zero-padded KxK conv, flat (K*K, HW)."""
    p = np.arange(H * W)
    row, col = p // W, p % W
    m = np.zeros((K * K, H * W), np.float32)
    for dy in range(K):
        for dx in range(K):
            oy, ox = dy - PAD, dx - PAD
            m[dy * K + dx] = (((row + oy) >= 0) & ((row + oy) < H) &
                              ((col + ox) >= 0) & ((col + ox) < W))
    return m


def _choose_bt(B):
    """Largest divisor of B <= 8 (sublane batch packing) that still leaves >= 2 grid
    steps when B >= 2, so both v7x TensorCores get work under 'parallel' semantics."""
    divisors = [d for d in range(1, min(8, B) + 1) if B % d == 0]
    multi_step = [d for d in divisors if B // d >= 2]
    return max(multi_step) if multi_step else max(divisors)


def spatial_enhancement(x, w, b, bt=None):
    B, C, H, W = x.shape
    HW = H * W
    if bt is None:
        bt = _choose_bt(B)
    assert B % bt == 0, (B, bt)

    x_flat = x.reshape(B, C, HW)                   # lane-dense layout (HW multiple of 128 here)
    # Fold conv weight + zero-pad boundary masks into one per-tap multiplier
    # (kept traceable in w: masks are numpy constants, the multiply is a tiny XLA op).
    wmask = jnp.asarray(_tap_masks(H, W)) * jnp.reshape(w, (K * K, 1)).astype(jnp.float32)
    bias = jnp.reshape(b, (1,)).astype(jnp.float32)

    itemsize = x.dtype.itemsize
    block_bytes = bt * C * HW * itemsize
    wmask_bytes = K * K * HW * 4
    # in + out double-buffered blocks + (unchanging, fetched-once) wmask + margin.
    vmem_needed = 4 * block_bytes + 2 * wmask_bytes + (4 << 20)
    vmem_limit = int(max(16 << 20, min(96 << 20, vmem_needed)))

    cost = pl.CostEstimate(
        flops=B * HW * (3 * C + 2 * K * K + 4),
        transcendentals=B * HW * 2,                # sqrt + sigmoid
        bytes_accessed=2 * B * C * HW * itemsize + wmask_bytes + 4,
    )

    out_flat = pl.pallas_call(
        functools.partial(_spatial_enhancement_kernel, H=H, W=W),
        out_shape=jax.ShapeDtypeStruct((B, C, HW), x.dtype),
        grid_spec=pltpu.PrefetchScalarGridSpec(
            num_scalar_prefetch=0,
            grid=(B // bt,),
            in_specs=[
                pl.BlockSpec(memory_space=pltpu.MemorySpace.SMEM),   # bias (1,)
                pl.BlockSpec((K * K, HW), lambda gi: (0, 0)),        # folded weight*mask
                pl.BlockSpec((bt, C, HW), lambda gi: (gi, 0, 0)),    # x (flat, Bt batches)
            ],
            out_specs=pl.BlockSpec((bt, C, HW), lambda gi: (gi, 0, 0)),
        ),
        compiler_params=pltpu.CompilerParams(
            dimension_semantics=("parallel",),
            vmem_limit_bytes=vmem_limit),
        cost_estimate=cost,
    )(bias, wmask, x_flat)
    return out_flat.reshape(B, C, H, W)


def reference(x, w, b):
    # Pure-JAX reference mirroring the PyTorch module.
    ctx = jnp.sqrt(jnp.sum(x * x, axis=1, keepdims=True) + EPS)        # (B,1,H,W)
    conv = jax.lax.conv_general_dilated(
        ctx, w[None, None, :, :],
        window_strides=(1, 1),
        padding=((PAD, PAD), (PAD, PAD)),
        dimension_numbers=("NCHW", "OIHW", "NCHW"),
    ) + b[0]
    attn = jax.nn.sigmoid(conv)
    return x * attn


if __name__ == "__main__":
    key = jax.random.PRNGKey(0)
    kx, kw, kb = jax.random.split(key, 3)

    # Small shapes; B=4 exercises both sublane batch-packing (Bt=2) and a 2-step grid.
    B, C, H, W = 4, 4, 16, 16
    x = jax.random.normal(kx, (B, C, H, W), jnp.float32)

    # Deterministic parameter init for Conv2d(1, 1, kernel_size=7, padding=3)
    # (PyTorch-style uniform(-1/sqrt(fan_in), 1/sqrt(fan_in))).
    fan_in = 1 * K * K
    bound = 1.0 / np.sqrt(fan_in)
    w = jax.random.uniform(kw, (K, K), jnp.float32, -bound, bound)
    b = jax.random.uniform(kb, (1,), jnp.float32, -bound, bound)

    out = spatial_enhancement(x, w, b)
    out = jax.block_until_ready(out)

    ref = reference(x, w, b)
    np.testing.assert_allclose(np.asarray(out), np.asarray(ref), rtol=1e-5, atol=1e-5)
    print("KERNEL_OK")
</pallas_src>

<mosaic_0001>
module attributes {stable_mosaic.version = 11 : i64} {
  func.func @_spatial_enhancement_kernel(%arg0: i32, %arg1: memref<1xf32, #tpu.memory_space<smem>>, %arg2: memref<49x256xf32, #tpu.memory_space<vmem>>, %arg3: memref<2x4x256xf32, #tpu.memory_space<vmem>>, %arg4: memref<2x4x256xf32, #tpu.memory_space<vmem>>) attributes {dimension_semantics = [#tpu.dimension_semantics<parallel>], iteration_bounds = array<i64: 2>, scalar_prefetch = 0 : i64, scratch_operands = 0 : i64, tpu.core_type = #tpu.core_type<tc>, window_params = [{transform_indices = @transform_0, window_bounds = array<i64: 1>}, {pipeline_mode = #tpu.pipeline_mode<synchronous>, transform_indices = @transform_1, window_bounds = array<i64: 49, 256>}, {transform_indices = @transform_2, window_bounds = array<i64: 2, 4, 256>}, {transform_indices = @transform_3, window_bounds = array<i64: 2, 4, 256>}]} {
    %c0 = arith.constant 0 : index
    %c0_0 = arith.constant 0 : index
    %c0_1 = arith.constant 0 : index
    %0 = vector.load %arg3[%c0, %c0_0, %c0_1] : memref<2x4x256xf32, #tpu.memory_space<vmem>>, vector<2x4x256xf32>
    %1 = arith.mulf %0, %0 : vector<2x4x256xf32>
    %cst = arith.constant dense<0.000000e+00> : vector<2x256xf32>
    %2 = vector.multi_reduction <add>, %1, %cst [1] : vector<2x4x256xf32> to vector<2x256xf32>
    %cst_2 = arith.constant 9.99999974E-6 : f32
    %3 = vector.broadcast %cst_2 : f32 to vector<2x256xf32>
    %4 = arith.addf %2, %3 : vector<2x256xf32>
    %5 = math.sqrt %4 : vector<2x256xf32>
    %c0_3 = arith.constant 0 : index
    %6 = memref.load %arg1[%c0_3] : memref<1xf32, #tpu.memory_space<smem>>
    %7 = vector.broadcast %6 : f32 to vector<2x256xf32>
    %c51_i32 = arith.constant 51 : i32
    %8 = tpu.dynamic_rotate %5 by %c51_i32 dim 1 : vector<2x256xf32>, i32 -> vector<2x256xf32>
    %c0_4 = arith.constant 0 : index
    %c0_5 = arith.constant 0 : index
    %9 = vector.load %arg2[%c0_4, %c0_5] : memref<49x256xf32, #tpu.memory_space<vmem>>, vector<1x256xf32>
    %10 = vector.broadcast %9 : vector<1x256xf32> to vector<2x256xf32>
    %11 = arith.mulf %8, %10 : vector<2x256xf32>
    %12 = arith.addf %7, %11 : vector<2x256xf32>
    %c50_i32 = arith.constant 50 : i32
    %13 = tpu.dynamic_rotate %5 by %c50_i32 dim 1 : vector<2x256xf32>, i32 -> vector<2x256xf32>
    %c1 = arith.constant 1 : index
    %c0_6 = arith.constant 0 : index
    %14 = vector.load %arg2[%c1, %c0_6] : memref<49x256xf32, #tpu.memory_space<vmem>>, vector<1x256xf32>
    %15 = vector.broadcast %14 : vector<1x256xf32> to vector<2x256xf32>
    %16 = arith.mulf %13, %15 : vector<2x256xf32>
    %17 = arith.addf %12, %16 : vector<2x256xf32>
    %c49_i32 = arith.constant 49 : i32
    %18 = tpu.dynamic_rotate %5 by %c49_i32 dim 1 : vector<2x256xf32>, i32 -> vector<2x256xf32>
    %c2 = arith.constant 2 : index
    %c0_7 = arith.constant 0 : index
    %19 = vector.load %arg2[%c2, %c0_7] : memref<49x256xf32, #tpu.memory_space<vmem>>, vector<1x256xf32>
    %20 = vector.broadcast %19 : vector<1x256xf32> to vector<2x256xf32>
    %21 = arith.mulf %18, %20 : vector<2x256xf32>
    %22 = arith.addf %17, %21 : vector<2x256xf32>
    %c48_i32 = arith.constant 48 : i32
    %23 = tpu.dynamic_rotate %5 by %c48_i32 dim 1 : vector<2x256xf32>, i32 -> vector<2x256xf32>
    %c3 = arith.constant 3 : index
    %c0_8 = arith.constant 0 : index
    %24 = vector.load %arg2[%c3, %c0_8] : memref<49x256xf32, #tpu.memory_space<vmem>>, vector<1x256xf32>
    %25 = vector.broadcast %24 : vector<1x256xf32> to vector<2x256xf32>
    %26 = arith.mulf %23, %25 : vector<2x256xf32>
    %27 = arith.addf %22, %26 : vector<2x256xf32>
    %c47_i32 = arith.constant 47 : i32
    %28 = tpu.dynamic_rotate %5 by %c47_i32 dim 1 : vector<2x256xf32>, i32 -> vector<2x256xf32>
    %c4 = arith.constant 4 : index
    %c0_9 = arith.constant 0 : index
    %29 = vector.load %arg2[%c4, %c0_9] : memref<49x256xf32, #tpu.memory_space<vmem>>, vector<1x256xf32>
    %30 = vector.broadcast %29 : vector<1x256xf32> to vector<2x256xf32>
    %31 = arith.mulf %28, %30 : vector<2x256xf32>
    %32 = arith.addf %27, %31 : vector<2x256xf32>
    %c46_i32 = arith.constant 46 : i32
    %33 = tpu.dynamic_rotate %5 by %c46_i32 dim 1 : vector<2x256xf32>, i32 -> vector<2x256xf32>
    %c5 = arith.constant 5 : index
    %c0_10 = arith.constant 0 : index
    %34 = vector.load %arg2[%c5, %c0_10] : memref<49x256xf32, #tpu.memory_space<vmem>>, vector<1x256xf32>
    %35 = vector.broadcast %34 : vector<1x256xf32> to vector<2x256xf32>
    %36 = arith.mulf %33, %35 : vector<2x256xf32>
    %37 = arith.addf %32, %36 : vector<2x256xf32>
    %c45_i32 = arith.constant 45 : i32
    %38 = tpu.dynamic_rotate %5 by %c45_i32 dim 1 : vector<2x256xf32>, i32 -> vector<2x256xf32>
    %c6 = arith.constant 6 : index
    %c0_11 = arith.constant 0 : index
    %39 = vector.load %arg2[%c6, %c0_11] : memref<49x256xf32, #tpu.memory_space<vmem>>, vector<1x256xf32>
    %40 = vector.broadcast %39 : vector<1x256xf32> to vector<2x256xf32>
    %41 = arith.mulf %38, %40 : vector<2x256xf32>
    %42 = arith.addf %37, %41 : vector<2x256xf32>
    %c35_i32 = arith.constant 35 : i32
    %43 = tpu.dynamic_rotate %5 by %c35_i32 dim 1 : vector<2x256xf32>, i32 -> vector<2x256xf32>
    %c7 = arith.constant 7 : index
    %c0_12 = arith.constant 0 : index
    %44 = vector.load %arg2[%c7, %c0_12] : memref<49x256xf32, #tpu.memory_space<vmem>>, vector<1x256xf32>
    %45 = vector.broadcast %44 : vector<1x256xf32> to vector<2x256xf32>
    %46 = arith.mulf %43, %45 : vector<2x256xf32>
    %47 = arith.addf %42, %46 : vector<2x256xf32>
    %c34_i32 = arith.constant 34 : i32
    %48 = tpu.dynamic_rotate %5 by %c34_i32 dim 1 : vector<2x256xf32>, i32 -> vector<2x256xf32>
    %c8 = arith.constant 8 : index
    %c0_13 = arith.constant 0 : index
    %49 = vector.load %arg2[%c8, %c0_13] : memref<49x256xf32, #tpu.memory_space<vmem>>, vector<1x256xf32>
    %50 = vector.broadcast %49 : vector<1x256xf32> to vector<2x256xf32>
    %51 = arith.mulf %48, %50 : vector<2x256xf32>
    %52 = arith.addf %47, %51 : vector<2x256xf32>
    %c33_i32 = arith.constant 33 : i32
    %53 = tpu.dynamic_rotate %5 by %c33_i32 dim 1 : vector<2x256xf32>, i32 -> vector<2x256xf32>
    %c9 = arith.constant 9 : index
    %c0_14 = arith.constant 0 : index
    %54 = vector.load %arg2[%c9, %c0_14] : memref<49x256xf32, #tpu.memory_space<vmem>>, vector<1x256xf32>
    %55 = vector.broadcast %54 : vector<1x256xf32> to vector<2x256xf32>
    %56 = arith.mulf %53, %55 : vector<2x256xf32>
    %57 = arith.addf %52, %56 : vector<2x256xf32>
    %c32_i32 = arith.constant 32 : i32
    %58 = tpu.dynamic_rotate %5 by %c32_i32 dim 1 : vector<2x256xf32>, i32 -> vector<2x256xf32>
    %c10 = arith.constant 10 : index
    %c0_15 = arith.constant 0 : index
    %59 = vector.load %arg2[%c10, %c0_15] : memref<49x256xf32, #tpu.memory_space<vmem>>, vector<1x256xf32>
    %60 = vector.broadcast %59 : vector<1x256xf32> to vector<2x256xf32>
    %61 = arith.mulf %58, %60 : vector<2x256xf32>
    %62 = arith.addf %57, %61 : vector<2x256xf32>
    %c31_i32 = arith.constant 31 : i32
    %63 = tpu.dynamic_rotate %5 by %c31_i32 dim 1 : vector<2x256xf32>, i32 -> vector<2x256xf32>
    %c11 = arith.constant 11 : index
    %c0_16 = arith.constant 0 : index
    %64 = vector.load %arg2[%c11, %c0_16] : memref<49x256xf32, #tpu.memory_space<vmem>>, vector<1x256xf32>
    %65 = vector.broadcast %64 : vector<1x256xf32> to vector<2x256xf32>
    %66 = arith.mulf %63, %65 : vector<2x256xf32>
    %67 = arith.addf %62, %66 : vector<2x256xf32>
    %c30_i32 = arith.constant 30 : i32
    %68 = tpu.dynamic_rotate %5 by %c30_i32 dim 1 : vector<2x256xf32>, i32 -> vector<2x256xf32>
    %c12 = arith.constant 12 : index
    %c0_17 = arith.constant 0 : index
    %69 = vector.load %arg2[%c12, %c0_17] : memref<49x256xf32, #tpu.memory_space<vmem>>, vector<1x256xf32>
    %70 = vector.broadcast %69 : vector<1x256xf32> to vector<2x256xf32>
    %71 = arith.mulf %68, %70 : vector<2x256xf32>
    %72 = arith.addf %67, %71 : vector<2x256xf32>
    %c29_i32 = arith.constant 29 : i32
    %73 = tpu.dynamic_rotate %5 by %c29_i32 dim 1 : vector<2x256xf32>, i32 -> vector<2x256xf32>
    %c13 = arith.constant 13 : index
    %c0_18 = arith.constant 0 : index
    %74 = vector.load %arg2[%c13, %c0_18] : memref<49x256xf32, #tpu.memory_space<vmem>>, vector<1x256xf32>
    %75 = vector.broadcast %74 : vector<1x256xf32> to vector<2x256xf32>
    %76 = arith.mulf %73, %75 : vector<2x256xf32>
    %77 = arith.addf %72, %76 : vector<2x256xf32>
    %c19_i32 = arith.constant 19 : i32
    %78 = tpu.dynamic_rotate %5 by %c19_i32 dim 1 : vector<2x256xf32>, i32 -> vector<2x256xf32>
    %c14 = arith.constant 14 : index
    %c0_19 = arith.constant 0 : index
    %79 = vector.load %arg2[%c14, %c0_19] : memref<49x256xf32, #tpu.memory_space<vmem>>, vector<1x256xf32>
    %80 = vector.broadcast %79 : vector<1x256xf32> to vector<2x256xf32>
    %81 = arith.mulf %78, %80 : vector<2x256xf32>
    %82 = arith.addf %77, %81 : vector<2x256xf32>
    %c18_i32 = arith.constant 18 : i32
    %83 = tpu.dynamic_rotate %5 by %c18_i32 dim 1 : vector<2x256xf32>, i32 -> vector<2x256xf32>
    %c15 = arith.constant 15 : index
    %c0_20 = arith.constant 0 : index
    %84 = vector.load %arg2[%c15, %c0_20] : memref<49x256xf32, #tpu.memory_space<vmem>>, vector<1x256xf32>
    %85 = vector.broadcast %84 : vector<1x256xf32> to vector<2x256xf32>
    %86 = arith.mulf %83, %85 : vector<2x256xf32>
    %87 = arith.addf %82, %86 : vector<2x256xf32>
    %c17_i32 = arith.constant 17 : i32
    %88 = tpu.dynamic_rotate %5 by %c17_i32 dim 1 : vector<2x256xf32>, i32 -> vector<2x256xf32>
    %c16 = arith.constant 16 : index
    %c0_21 = arith.constant 0 : index
    %89 = vector.load %arg2[%c16, %c0_21] : memref<49x256xf32, #tpu.memory_space<vmem>>, vector<1x256xf32>
    %90 = vector.broadcast %89 : vector<1x256xf32> to vector<2x256xf32>
    %91 = arith.mulf %88, %90 : vector<2x256xf32>
    %92 = arith.addf %87, %91 : vector<2x256xf32>
    %c16_i32 = arith.constant 16 : i32
    %93 = tpu.dynamic_rotate %5 by %c16_i32 dim 1 : vector<2x256xf32>, i32 -> vector<2x256xf32>
    %c17 = arith.constant 17 : index
    %c0_22 = arith.constant 0 : index
    %94 = vector.load %arg2[%c17, %c0_22] : memref<49x256xf32, #tpu.memory_space<vmem>>, vector<1x256xf32>
    %95 = vector.broadcast %94 : vector<1x256xf32> to vector<2x256xf32>
    %96 = arith.mulf %93, %95 : vector<2x256xf32>
    %97 = arith.addf %92, %96 : vector<2x256xf32>
    %c15_i32 = arith.constant 15 : i32
    %98 = tpu.dynamic_rotate %5 by %c15_i32 dim 1 : vector<2x256xf32>, i32 -> vector<2x256xf32>
    %c18 = arith.constant 18 : index
    %c0_23 = arith.constant 0 : index
    %99 = vector.load %arg2[%c18, %c0_23] : memref<49x256xf32, #tpu.memory_space<vmem>>, vector<1x256xf32>
    %100 = vector.broadcast %99 : vector<1x256xf32> to vector<2x256xf32>
    %101 = arith.mulf %98, %100 : vector<2x256xf32>
    %102 = arith.addf %97, %101 : vector<2x256xf32>
    %c14_i32 = arith.constant 14 : i32
    %103 = tpu.dynamic_rotate %5 by %c14_i32 dim 1 : vector<2x256xf32>, i32 -> vector<2x256xf32>
    %c19 = arith.constant 19 : index
    %c0_24 = arith.constant 0 : index
    %104 = vector.load %arg2[%c19, %c0_24] : memref<49x256xf32, #tpu.memory_space<vmem>>, vector<1x256xf32>
    %105 = vector.broadcast %104 : vector<1x256xf32> to vector<2x256xf32>
    %106 = arith.mulf %103, %105 : vector<2x256xf32>
    %107 = arith.addf %102, %106 : vector<2x256xf32>
    %c13_i32 = arith.constant 13 : i32
    %108 = tpu.dynamic_rotate %5 by %c13_i32 dim 1 : vector<2x256xf32>, i32 -> vector<2x256xf32>
    %c20 = arith.constant 20 : index
    %c0_25 = arith.constant 0 : index
    %109 = vector.load %arg2[%c20, %c0_25] : memref<49x256xf32, #tpu.memory_space<vmem>>, vector<1x256xf32>
    %110 = vector.broadcast %109 : vector<1x256xf32> to vector<2x256xf32>
    %111 = arith.mulf %108, %110 : vector<2x256xf32>
    %112 = arith.addf %107, %111 : vector<2x256xf32>
    %c3_i32 = arith.constant 3 : i32
    %113 = tpu.dynamic_rotate %5 by %c3_i32 dim 1 : vector<2x256xf32>, i32 -> vector<2x256xf32>
    %c21 = arith.constant 21 : index
    %c0_26 = arith.constant 0 : index
    %114 = vector.load %arg2[%c21, %c0_26] : memref<49x256xf32, #tpu.memory_space<vmem>>, vector<1x256xf32>
    %115 = vector.broadcast %114 : vector<1x256xf32> to vector<2x256xf32>
    %116 = arith.mulf %113, %115 : vector<2x256xf32>
    %117 = arith.addf %112, %116 : vector<2x256xf32>
    %c2_i32 = arith.constant 2 : i32
    %118 = tpu.dynamic_rotate %5 by %c2_i32 dim 1 : vector<2x256xf32>, i32 -> vector<2x256xf32>
    %c22 = arith.constant 22 : index
    %c0_27 = arith.constant 0 : index
    %119 = vector.load %arg2[%c22, %c0_27] : memref<49x256xf32, #tpu.memory_space<vmem>>, vector<1x256xf32>
    %120 = vector.broadcast %119 : vector<1x256xf32> to vector<2x256xf32>
    %121 = arith.mulf %118, %120 : vector<2x256xf32>
    %122 = arith.addf %117, %121 : vector<2x256xf32>
    %c1_i32 = arith.constant 1 : i32
    %123 = tpu.dynamic_rotate %5 by %c1_i32 dim 1 : vector<2x256xf32>, i32 -> vector<2x256xf32>
    %c23 = arith.constant 23 : index
    %c0_28 = arith.constant 0 : index
    %124 = vector.load %arg2[%c23, %c0_28] : memref<49x256xf32, #tpu.memory_space<vmem>>, vector<1x256xf32>
    %125 = vector.broadcast %124 : vector<1x256xf32> to vector<2x256xf32>
    %126 = arith.mulf %123, %125 : vector<2x256xf32>
    %127 = arith.addf %122, %126 : vector<2x256xf32>
    %c24 = arith.constant 24 : index
    %c0_29 = arith.constant 0 : index
    %128 = vector.load %arg2[%c24, %c0_29] : memref<49x256xf32, #tpu.memory_space<vmem>>, vector<1x256xf32>
    %129 = vector.broadcast %128 : vector<1x256xf32> to vector<2x256xf32>
    %130 = arith.mulf %5, %129 : vector<2x256xf32>
    %131 = arith.addf %127, %130 : vector<2x256xf32>
    %c255_i32 = arith.constant 255 : i32
    %132 = tpu.dynamic_rotate %5 by %c255_i32 dim 1 : vector<2x256xf32>, i32 -> vector<2x256xf32>
    %c25 = arith.constant 25 : index
    %c0_30 = arith.constant 0 : index
    %133 = vector.load %arg2[%c25, %c0_30] : memref<49x256xf32, #tpu.memory_space<vmem>>, vector<1x256xf32>
    %134 = vector.broadcast %133 : vector<1x256xf32> to vector<2x256xf32>
    %135 = arith.mulf %132, %134 : vector<2x256xf32>
    %136 = arith.addf %131, %135 : vector<2x256xf32>
    %c254_i32 = arith.constant 254 : i32
    %137 = tpu.dynamic_rotate %5 by %c254_i32 dim 1 : vector<2x256xf32>, i32 -> vector<2x256xf32>
    %c26 = arith.constant 26 : index
    %c0_31 = arith.constant 0 : index
    %138 = vector.load %arg2[%c26, %c0_31] : memref<49x256xf32, #tpu.memory_space<vmem>>, vector<1x256xf32>
    %139 = vector.broadcast %138 : vector<1x256xf32> to vector<2x256xf32>
    %140 = arith.mulf %137, %139 : vector<2x256xf32>
    %141 = arith.addf %136, %140 : vector<2x256xf32>
    %c253_i32 = arith.constant 253 : i32
    %142 = tpu.dynamic_rotate %5 by %c253_i32 dim 1 : vector<2x256xf32>, i32 -> vector<2x256xf32>
    %c27 = arith.constant 27 : index
    %c0_32 = arith.constant 0 : index
    %143 = vector.load %arg2[%c27, %c0_32] : memref<49x256xf32, #tpu.memory_space<vmem>>, vector<1x256xf32>
    %144 = vector.broadcast %143 : vector<1x256xf32> to vector<2x256xf32>
    %145 = arith.mulf %142, %144 : vector<2x256xf32>
    %146 = arith.addf %141, %145 : vector<2x256xf32>
    %c243_i32 = arith.constant 243 : i32
    %147 = tpu.dynamic_rotate %5 by %c243_i32 dim 1 : vector<2x256xf32>, i32 -> vector<2x256xf32>
    %c28 = arith.constant 28 : index
    %c0_33 = arith.constant 0 : index
    %148 = vector.load %arg2[%c28, %c0_33] : memref<49x256xf32, #tpu.memory_space<vmem>>, vector<1x256xf32>
    %149 = vector.broadcast %148 : vector<1x256xf32> to vector<2x256xf32>
    %150 = arith.mulf %147, %149 : vector<2x256xf32>
    %151 = arith.addf %146, %150 : vector<2x256xf32>
    %c242_i32 = arith.constant 242 : i32
    %152 = tpu.dynamic_rotate %5 by %c242_i32 dim 1 : vector<2x256xf32>, i32 -> vector<2x256xf32>
    %c29 = arith.constant 29 : index
    %c0_34 = arith.constant 0 : index
    %153 = vector.load %arg2[%c29, %c0_34] : memref<49x256xf32, #tpu.memory_space<vmem>>, vector<1x256xf32>
    %154 = vector.broadcast %153 : vector<1x256xf32> to vector<2x256xf32>
    %155 = arith.mulf %152, %154 : vector<2x256xf32>
    %156 = arith.addf %151, %155 : vector<2x256xf32>
    %c241_i32 = arith.constant 241 : i32
    %157 = tpu.dynamic_rotate %5 by %c241_i32 dim 1 : vector<2x256xf32>, i32 -> vector<2x256xf32>
    %c30 = arith.constant 30 : index
    %c0_35 = arith.constant 0 : index
    %158 = vector.load %arg2[%c30, %c0_35] : memref<49x256xf32, #tpu.memory_space<vmem>>, vector<1x256xf32>
    %159 = vector.broadcast %158 : vector<1x256xf32> to vector<2x256xf32>
    %160 = arith.mulf %157, %159 : vector<2x256xf32>
    %161 = arith.addf %156, %160 : vector<2x256xf32>
    %c240_i32 = arith.constant 240 : i32
    %162 = tpu.dynamic_rotate %5 by %c240_i32 dim 1 : vector<2x256xf32>, i32 -> vector<2x256xf32>
    %c31 = arith.constant 31 : index
    %c0_36 = arith.constant 0 : index
    %163 = vector.load %arg2[%c31, %c0_36] : memref<49x256xf32, #tpu.memory_space<vmem>>, vector<1x256xf32>
    %164 = vector.broadcast %163 : vector<1x256xf32> to vector<2x256xf32>
    %165 = arith.mulf %162, %164 : vector<2x256xf32>
    %166 = arith.addf %161, %165 : vector<2x256xf32>
    %c239_i32 = arith.constant 239 : i32
    %167 = tpu.dynamic_rotate %5 by %c239_i32 dim 1 : vector<2x256xf32>, i32 -> vector<2x256xf32>
    %c32 = arith.constant 32 : index
    %c0_37 = arith.constant 0 : index
    %168 = vector.load %arg2[%c32, %c0_37] : memref<49x256xf32, #tpu.memory_space<vmem>>, vector<1x256xf32>
    %169 = vector.broadcast %168 : vector<1x256xf32> to vector<2x256xf32>
    %170 = arith.mulf %167, %169 : vector<2x256xf32>
    %171 = arith.addf %166, %170 : vector<2x256xf32>
    %c238_i32 = arith.constant 238 : i32
    %172 = tpu.dynamic_rotate %5 by %c238_i32 dim 1 : vector<2x256xf32>, i32 -> vector<2x256xf32>
    %c33 = arith.constant 33 : index
    %c0_38 = arith.constant 0 : index
    %173 = vector.load %arg2[%c33, %c0_38] : memref<49x256xf32, #tpu.memory_space<vmem>>, vector<1x256xf32>
    %174 = vector.broadcast %173 : vector<1x256xf32> to vector<2x256xf32>
    %175 = arith.mulf %172, %174 : vector<2x256xf32>
    %176 = arith.addf %171, %175 : vector<2x256xf32>
    %c237_i32 = arith.constant 237 : i32
    %177 = tpu.dynamic_rotate %5 by %c237_i32 dim 1 : vector<2x256xf32>, i32 -> vector<2x256xf32>
    %c34 = arith.constant 34 : index
    %c0_39 = arith.constant 0 : index
    %178 = vector.load %arg2[%c34, %c0_39] : memref<49x256xf32, #tpu.memory_space<vmem>>, vector<1x256xf32>
    %179 = vector.broadcast %178 : vector<1x256xf32> to vector<2x256xf32>
    %180 = arith.mulf %177, %179 : vector<2x256xf32>
    %181 = arith.addf %176, %180 : vector<2x256xf32>
    %c227_i32 = arith.constant 227 : i32
    %182 = tpu.dynamic_rotate %5 by %c227_i32 dim 1 : vector<2x256xf32>, i32 -> vector<2x256xf32>
    %c35 = arith.constant 35 : index
    %c0_40 = arith.constant 0 : index
    %183 = vector.load %arg2[%c35, %c0_40] : memref<49x256xf32, #tpu.memory_space<vmem>>, vector<1x256xf32>
    %184 = vector.broadcast %183 : vector<1x256xf32> to vector<2x256xf32>
    %185 = arith.mulf %182, %184 : vector<2x256xf32>
    %186 = arith.addf %181, %185 : vector<2x256xf32>
    %c226_i32 = arith.constant 226 : i32
    %187 = tpu.dynamic_rotate %5 by %c226_i32 dim 1 : vector<2x256xf32>, i32 -> vector<2x256xf32>
    %c36 = arith.constant 36 : index
    %c0_41 = arith.constant 0 : index
    %188 = vector.load %arg2[%c36, %c0_41] : memref<49x256xf32, #tpu.memory_space<vmem>>, vector<1x256xf32>
    %189 = vector.broadcast %188 : vector<1x256xf32> to vector<2x256xf32>
    %190 = arith.mulf %187, %189 : vector<2x256xf32>
    %191 = arith.addf %186, %190 : vector<2x256xf32>
    %c225_i32 = arith.constant 225 : i32
    %192 = tpu.dynamic_rotate %5 by %c225_i32 dim 1 : vector<2x256xf32>, i32 -> vector<2x256xf32>
    %c37 = arith.constant 37 : index
    %c0_42 = arith.constant 0 : index
    %193 = vector.load %arg2[%c37, %c0_42] : memref<49x256xf32, #tpu.memory_space<vmem>>, vector<1x256xf32>
    %194 = vector.broadcast %193 : vector<1x256xf32> to vector<2x256xf32>
    %195 = arith.mulf %192, %194 : vector<2x256xf32>
    %196 = arith.addf %191, %195 : vector<2x256xf32>
    %c224_i32 = arith.constant 224 : i32
    %197 = tpu.dynamic_rotate %5 by %c224_i32 dim 1 : vector<2x256xf32>, i32 -> vector<2x256xf32>
    %c38 = arith.constant 38 : index
    %c0_43 = arith.constant 0 : index
    %198 = vector.load %arg2[%c38, %c0_43] : memref<49x256xf32, #tpu.memory_space<vmem>>, vector<1x256xf32>
    %199 = vector.broadcast %198 : vector<1x256xf32> to vector<2x256xf32>
    %200 = arith.mulf %197, %199 : vector<2x256xf32>
    %201 = arith.addf %196, %200 : vector<2x256xf32>
    %c223_i32 = arith.constant 223 : i32
    %202 = tpu.dynamic_rotate %5 by %c223_i32 dim 1 : vector<2x256xf32>, i32 -> vector<2x256xf32>
    %c39 = arith.constant 39 : index
    %c0_44 = arith.constant 0 : index
    %203 = vector.load %arg2[%c39, %c0_44] : memref<49x256xf32, #tpu.memory_space<vmem>>, vector<1x256xf32>
    %204 = vector.broadcast %203 : vector<1x256xf32> to vector<2x256xf32>
    %205 = arith.mulf %202, %204 : vector<2x256xf32>
    %206 = arith.addf %201, %205 : vector<2x256xf32>
    %c222_i32 = arith.constant 222 : i32
    %207 = tpu.dynamic_rotate %5 by %c222_i32 dim 1 : vector<2x256xf32>, i32 -> vector<2x256xf32>
    %c40 = arith.constant 40 : index
    %c0_45 = arith.constant 0 : index
    %208 = vector.load %arg2[%c40, %c0_45] : memref<49x256xf32, #tpu.memory_space<vmem>>, vector<1x256xf32>
    %209 = vector.broadcast %208 : vector<1x256xf32> to vector<2x256xf32>
    %210 = arith.mulf %207, %209 : vector<2x256xf32>
    %211 = arith.addf %206, %210 : vector<2x256xf32>
    %c221_i32 = arith.constant 221 : i32
    %212 = tpu.dynamic_rotate %5 by %c221_i32 dim 1 : vector<2x256xf32>, i32 -> vector<2x256xf32>
    %c41 = arith.constant 41 : index
    %c0_46 = arith.constant 0 : index
    %213 = vector.load %arg2[%c41, %c0_46] : memref<49x256xf32, #tpu.memory_space<vmem>>, vector<1x256xf32>
    %214 = vector.broadcast %213 : vector<1x256xf32> to vector<2x256xf32>
    %215 = arith.mulf %212, %214 : vector<2x256xf32>
    %216 = arith.addf %211, %215 : vector<2x256xf32>
    %c211_i32 = arith.constant 211 : i32
    %217 = tpu.dynamic_rotate %5 by %c211_i32 dim 1 : vector<2x256xf32>, i32 -> vector<2x256xf32>
    %c42 = arith.constant 42 : index
    %c0_47 = arith.constant 0 : index
    %218 = vector.load %arg2[%c42, %c0_47] : memref<49x256xf32, #tpu.memory_space<vmem>>, vector<1x256xf32>
    %219 = vector.broadcast %218 : vector<1x256xf32> to vector<2x256xf32>
    %220 = arith.mulf %217, %219 : vector<2x256xf32>
    %221 = arith.addf %216, %220 : vector<2x256xf32>
    %c210_i32 = arith.constant 210 : i32
    %222 = tpu.dynamic_rotate %5 by %c210_i32 dim 1 : vector<2x256xf32>, i32 -> vector<2x256xf32>
    %c43 = arith.constant 43 : index
    %c0_48 = arith.constant 0 : index
    %223 = vector.load %arg2[%c43, %c0_48] : memref<49x256xf32, #tpu.memory_space<vmem>>, vector<1x256xf32>
    %224 = vector.broadcast %223 : vector<1x256xf32> to vector<2x256xf32>
    %225 = arith.mulf %222, %224 : vector<2x256xf32>
    %226 = arith.addf %221, %225 : vector<2x256xf32>
    %c209_i32 = arith.constant 209 : i32
    %227 = tpu.dynamic_rotate %5 by %c209_i32 dim 1 : vector<2x256xf32>, i32 -> vector<2x256xf32>
    %c44 = arith.constant 44 : index
    %c0_49 = arith.constant 0 : index
    %228 = vector.load %arg2[%c44, %c0_49] : memref<49x256xf32, #tpu.memory_space<vmem>>, vector<1x256xf32>
    %229 = vector.broadcast %228 : vector<1x256xf32> to vector<2x256xf32>
    %230 = arith.mulf %227, %229 : vector<2x256xf32>
    %231 = arith.addf %226, %230 : vector<2x256xf32>
    %c208_i32 = arith.constant 208 : i32
    %232 = tpu.dynamic_rotate %5 by %c208_i32 dim 1 : vector<2x256xf32>, i32 -> vector<2x256xf32>
    %c45 = arith.constant 45 : index
    %c0_50 = arith.constant 0 : index
    %233 = vector.load %arg2[%c45, %c0_50] : memref<49x256xf32, #tpu.memory_space<vmem>>, vector<1x256xf32>
    %234 = vector.broadcast %233 : vector<1x256xf32> to vector<2x256xf32>
    %235 = arith.mulf %232, %234 : vector<2x256xf32>
    %236 = arith.addf %231, %235 : vector<2x256xf32>
    %c207_i32 = arith.constant 207 : i32
    %237 = tpu.dynamic_rotate %5 by %c207_i32 dim 1 : vector<2x256xf32>, i32 -> vector<2x256xf32>
    %c46 = arith.constant 46 : index
    %c0_51 = arith.constant 0 : index
    %238 = vector.load %arg2[%c46, %c0_51] : memref<49x256xf32, #tpu.memory_space<vmem>>, vector<1x256xf32>
    %239 = vector.broadcast %238 : vector<1x256xf32> to vector<2x256xf32>
    %240 = arith.mulf %237, %239 : vector<2x256xf32>
    %241 = arith.addf %236, %240 : vector<2x256xf32>
    %c206_i32 = arith.constant 206 : i32
    %242 = tpu.dynamic_rotate %5 by %c206_i32 dim 1 : vector<2x256xf32>, i32 -> vector<2x256xf32>
    %c47 = arith.constant 47 : index
    %c0_52 = arith.constant 0 : index
    %243 = vector.load %arg2[%c47, %c0_52] : memref<49x256xf32, #tpu.memory_space<vmem>>, vector<1x256xf32>
    %244 = vector.broadcast %243 : vector<1x256xf32> to vector<2x256xf32>
    %245 = arith.mulf %242, %244 : vector<2x256xf32>
    %246 = arith.addf %241, %245 : vector<2x256xf32>
    %c205_i32 = arith.constant 205 : i32
    %247 = tpu.dynamic_rotate %5 by %c205_i32 dim 1 : vector<2x256xf32>, i32 -> vector<2x256xf32>
    %c48 = arith.constant 48 : index
    %c0_53 = arith.constant 0 : index
    %248 = vector.load %arg2[%c48, %c0_53] : memref<49x256xf32, #tpu.memory_space<vmem>>, vector<1x256xf32>
    %249 = vector.broadcast %248 : vector<1x256xf32> to vector<2x256xf32>
    %250 = arith.mulf %247, %249 : vector<2x256xf32>
    %251 = arith.addf %246, %250 : vector<2x256xf32>
    %252 = arith.negf %251 : vector<2x256xf32>
    %253 = math.exp %252 : vector<2x256xf32>
    %cst_54 = arith.constant 1.000000e+00 : f32
    %254 = vector.broadcast %cst_54 : f32 to vector<2x256xf32>
    %255 = arith.addf %254, %253 : vector<2x256xf32>
    %256 = arith.divf %254, %255 : vector<2x256xf32>
    %257 = vector.shape_cast %256 : vector<2x256xf32> to vector<2x1x256xf32>
    %258 = vector.broadcast %257 : vector<2x1x256xf32> to vector<2x4x256xf32>
    %259 = arith.mulf %0, %258 : vector<2x4x256xf32>
    %c0_55 = arith.constant 0 : index
    %c0_56 = arith.constant 0 : index
    %c0_57 = arith.constant 0 : index
    %260 = vector.load %arg4[%c0_55, %c0_56, %c0_57] : memref<2x4x256xf32, #tpu.memory_space<vmem>>, vector<2x4x256xf32>
    tpu.vector_store %arg4[%c0_55, %c0_56, %c0_57], %259 {strides = array<i32>} : memref<2x4x256xf32, #tpu.memory_space<vmem>>, vector<2x4x256xf32>,
    return
  }
  func.func @transform_0(%arg0: i32) -> i32 {
    %c0_i32 = arith.constant 0 : i32
    %c0_i32_0 = arith.constant 0 : i32
    return %c0_i32 : i32
  }
  func.func @transform_1(%arg0: i32) -> (i32, i32) {
    %c0_i32 = arith.constant 0 : i32
    %c0_i32_0 = arith.constant 0 : i32
    %c0_i32_1 = arith.constant 0 : i32
    return %c0_i32, %c0_i32_0 : i32, i32
  }
  func.func @transform_2(%arg0: i32) -> (i32, i32, i32) {
    %c0_i32 = arith.constant 0 : i32
    %c0_i32_0 = arith.constant 0 : i32
    %c0_i32_1 = arith.constant 0 : i32
    return %arg0, %c0_i32, %c0_i32_0 : i32, i32, i32
  }
  func.func @transform_3(%arg0: i32) -> (i32, i32, i32) {
    %c0_i32 = arith.constant 0 : i32
    %c0_i32_0 = arith.constant 0 : i32
    %c0_i32_1 = arith.constant 0 : i32
    return %arg0, %c0_i32, %c0_i32_0 : i32, i32, i32
  }
}

</mosaic_0001>

<llo_original>
// kernel: tpu_custom_call.1
$region0: #{tpu_custom_call.1}
  #allocation0 [shape = 'u32[]', space=smem, size = 0x4, offset = 0x4, fixed_abs, tag = 'smem constant byte address 0x4 - core index']
  #allocation1 [shape = 'u32[144,128]{1,0:T(1,128)}', space=vmem, size = 0x12000, scoped, tag = 'internal scratch']
  #allocation2 [shape = 'f32[1]{0:T(128)S(6)}', space=smem, size = 0x200, scoped, tag = 'scoped memory for tpu_custom_call.1']
  %s0 = inlined_call_operand.<no memory space> [shape: f32[1], index: 0, kind: input, shape index: {}]
  %s1 = inlined_call_operand.hbm [shape: f32[49,256], index: 1, kind: input, shape index: {}]
  %s2 = inlined_call_operand.hbm [shape: f32[4,4,256], index: 2, kind: input, shape index: {}]
  %s3 = inlined_call_operand.hbm [shape: f32[4,4,256], index: 3, kind: output, shape index: {}]
  %s4 = sld [smem:[#allocation0]]
  $region53: #{tpu_custom_call.1} parent=0
    _
  %s6 = ssub.s32 1, %s4
  %s7 = scalar_select 0, %s6, %s4
  %8 = sst [smem:[#allocation2]] %s0
  $region1: #{tpu_custom_call.1} parent=0
    #allocation3 [shape = 'u8[57344]{0}', space=vmem, size = 0xe000, scoped, tag = 'input window, operand 1, single buffered']
    #allocation4 [shape = 's32[2]{0}', space=sflag, size = 0x8, scoped, tag = 'scoped memory for tpu_custom_call.1']
    #allocation5 [shape = 's32[2]{0}', space=sflag, size = 0x8, scoped, tag = 'scoped memory for tpu_custom_call.1']
    #allocation6 [shape = 'u8[16384]{0}', space=vmem, size = 0x4000, scoped, tag = 'input window, operand 2']
    #allocation7 [shape = 's32[2]{0}', space=sflag, size = 0x8, scoped, tag = 'scoped memory for tpu_custom_call.1']
    #allocation8 [shape = 'u8[16384]{0}', space=vmem, size = 0x4000, scoped, tag = 'output window, operand 0']
    %9 = vsyncpa [#allocation4], 0
    %10 = vsyncpa [#allocation7], 0
    %s11 = scalar_lea.sflag [#allocation7], 1
    %12 = vsyncpa %s11, 0
    %13 = vsyncpa [#allocation5], 0
    %s14 = scalar_lea.sflag [#allocation5], 1
    %15 = vsyncpa %s14, 0
    loop: start=0, step=1, limit=4
    $region2: #{tpu_custom_call.1} parent=1 // loop_pre_header
      _
    $region3: #{tpu_custom_call.1} parent=1 // loop_header
      %s17 = sphi 0, %s21
      %p18 = scmp.ge.s32.totalorder %s17, 4
      %s25 = sphi 0, %s25
      %s27 = sphi 0, %s25
      %s28 = sphi 0, %s27
      %s42 = sphi 0, %s28
      %s46 = sphi 0, %s46
      %s48 = sphi 0, %s46
      %s49 = sphi 0, %s48
      %s63 = sphi 0, %s49
      %s69 = sphi 0, %s71
      %s72 = sphi 0, %s69
      %s73 = sphi 0, %s72
      %s89 = sphi 0, %s73
      %s95 = sphi 0, %s97
      %s98 = sphi 0, %s95
      %s99 = sphi 0, %s98
      %s115 = sphi 0, %s99
    $region4: #{tpu_custom_call.1} parent=1 // loop_header_branch
      %20 = sbr.rel (%p18) target = $region8
    $region5: #{tpu_custom_call.1} parent=1 // loop_body
      %s22 = ssub.s32 %s17, 1
      %s23 = ssub.s32 %s17, 2
      %s24 = sadd.s32 %s17, 1
      %s26 = sadd.s32 %s25, 1
      %p29 = scmp.eq.s32.totalorder %s17, 1
      %p30 = scmp.ne.s32.totalorder %s25, %s27
      %p31 = scmp.eq.s32.totalorder %s17, 0
      %p32 = por %p30, %p31
      %p33 = scmp.ne.s32.totalorder %s25, %s27
      %p34 = scmp.eq.s32.totalorder %s22, 1
      %p35 = por %p33, %p34
      %p36 = scmp.ne.s32.totalorder %s27, %s28
      %p37 = scmp.eq.s32.totalorder %s22, 0
      %p38 = por %p36, %p37
      %p39 = scmp.ne.s32.totalorder %s27, %s28
      %p40 = scmp.eq.s32.totalorder %s23, 1
      %p41 = por %p39, %p40
      %p43 = scmp.ne.s32.totalorder %s28, %s42
      %p44 = scmp.eq.s32.totalorder %s23, 0
      %p45 = por %p43, %p44
      %s47 = sadd.s32 %s46, 1
      %p50 = scmp.eq.s32.totalorder %s17, 1
      %p51 = scmp.ne.s32.totalorder %s46, %s48
      %p52 = scmp.eq.s32.totalorder %s17, 0
      %p53 = por %p51, %p52
      %p54 = scmp.ne.s32.totalorder %s46, %s48
      %p55 = scmp.eq.s32.totalorder %s22, 1
      %p56 = por %p54, %p55
      %p57 = scmp.ne.s32.totalorder %s48, %s49
      %p58 = scmp.eq.s32.totalorder %s22, 0
      %p59 = por %p57, %p58
      %p60 = scmp.ne.s32.totalorder %s48, %s49
      %p61 = scmp.eq.s32.totalorder %s23, 1
      %p62 = por %p60, %p61
      %p64 = scmp.ne.s32.totalorder %s49, %s63
      %p65 = scmp.eq.s32.totalorder %s23, 0
      %p66 = por %p64, %p65
      %s67 = ssub.s32 %s17, %s24
      %p68 = scmp.eq.s32.totalorder %s67, 0
      %s70 = sadd.s32 %s69, 1
      %s71 = scalar_select %p68, %s69, %s70
      %p74 = pneg %p68
      %p75 = scmp.eq.s32.totalorder %s17, 1
      %p76 = por %p74, %p75
      %p77 = scmp.ne.s32.totalorder %s69, %s72
      %p78 = scmp.eq.s32.totalorder %s17, 0
      %p79 = por %p77, %p78
      %p80 = scmp.ne.s32.totalorder %s69, %s72
      %p81 = scmp.eq.s32.totalorder %s22, 1
      %p82 = por %p80, %p81
      %p83 = scmp.ne.s32.totalorder %s72, %s73
      %p84 = scmp.eq.s32.totalorder %s22, 0
      %p85 = por %p83, %p84
      %p86 = scmp.ne.s32.totalorder %s72, %s73
      %p87 = scmp.eq.s32.totalorder %s23, 1
      %p88 = por %p86, %p87
      %p90 = scmp.ne.s32.totalorder %s73, %s89
      %p91 = scmp.eq.s32.totalorder %s23, 0
      %p92 = por %p90, %p91
      %s93 = ssub.s32 %s17, %s24
      %p94 = scmp.eq.s32.totalorder %s93, 0
      %s96 = sadd.s32 %s95, 1
      %s97 = scalar_select %p94, %s95, %s96
      %p100 = pneg %p94
      %p101 = scmp.eq.s32.totalorder %s17, 1
      %p102 = por %p100, %p101
      %p103 = scmp.ne.s32.totalorder %s95, %s98
      %p104 = scmp.eq.s32.totalorder %s17, 0
      %p105 = por %p103, %p104
      %p106 = scmp.ne.s32.totalorder %s95, %s98
      %p107 = scmp.eq.s32.totalorder %s22, 1
      %p108 = por %p106, %p107
      %p109 = scmp.ne.s32.totalorder %s98, %s99
      %p110 = scmp.eq.s32.totalorder %s22, 0
      %p111 = por %p109, %p110
      %p112 = scmp.ne.s32.totalorder %s98, %s99
      %p113 = scmp.eq.s32.totalorder %s23, 1
      %p114 = por %p112, %p113
      %p116 = scmp.ne.s32.totalorder %s99, %s115
      %p117 = scmp.eq.s32.totalorder %s23, 0
      %p118 = por %p116, %p117
      %p119 = scmp.le.s32.totalorder 1, %s17
      %p120 = scmp.lt.s32.totalorder %s17, 3
      %p121 = pnand %p119, %p120
      %p122 = pneg %p121
      // Predicated region
      $region9: #{tpu_custom_call.1} parent=5 // pred_check
        _
      $region10: #{tpu_custom_call.1} parent=5 // pred_check_branch
        %124 = sbr.rel (%p121) target = $region12
      $region11: #{tpu_custom_call.1} parent=5 // pred_region
        %s125 = ssub.s32 %s17, 1
        // Predicated region
        $region13: #{tpu_custom_call.1} parent=11 // pred_check
          %p126 = pneg %p38
        $region14: #{tpu_custom_call.1} parent=11 // pred_check_branch
          %128 = sbr.rel (%p126) target = $region16
        $region15: #{tpu_custom_call.1} parent=11 // pred_region
          _
        $region16: #{tpu_custom_call.1} parent=11 // pred_fallthru
          _
        // Predicated region
        $region17: #{tpu_custom_call.1} parent=11 // pred_check
          %p129 = pneg %p59
        $region18: #{tpu_custom_call.1} parent=11 // pred_check_branch
          %131 = sbr.rel (%p129) target = $region20
        $region19: #{tpu_custom_call.1} parent=11 // pred_region
          %s133 = ssub.s32 1792, 1792
          %134 = vsyncadd [#allocation4], %s133
          %s135 = sshll.u32 [#allocation3], 4
          %s136 = int_to_ptr.vmem [resolvable:$true] %s135
          %141 = dma.hbm_to_vmem [thread:$0]  %s1, 1792, %s136, [#allocation4], 256, 256, 16
        $region20: #{tpu_custom_call.1} parent=11 // pred_fallthru
          _
      $region12: #{tpu_custom_call.1} parent=5 // pred_fallthru
        _
      %p142 = scmp.lt.s32.totalorder %s17, 2
      // Predicated region
      $region21: #{tpu_custom_call.1} parent=5 // pred_check
        %p143 = pneg %p142
      $region22: #{tpu_custom_call.1} parent=5 // pred_check_branch
        %145 = sbr.rel (%p143) target = $region24
      $region23: #{tpu_custom_call.1} parent=5 // pred_region
        // Predicated region
        $region25: #{tpu_custom_call.1} parent=23 // pred_check
          %p146 = pneg %p79
        $region26: #{tpu_custom_call.1} parent=23 // pred_check_branch
          %148 = sbr.rel (%p146) target = $region28
        $region27: #{tpu_custom_call.1} parent=23 // pred_region
          %s149 = sand.u32 %s69, 1
          %s150 = scalar_lea.sflag [#allocation7], %s149
          %s151 = sand.u32 %s69, 1
          %s152 = smul.addr %s151, 16
          %s153 = scalar_lea.vmem [#allocation6], %s152
          %s154 = smul.u32 2, %s17
          %s156 = ssub.s32 256, 256
          %157 = vsyncadd %s150, %s156
          %s158 = smul.addr %s154, 2
          %s159 = smul.addr %s158, 64
          %s160 = scalar_lea.hbm %s2, %s159
          %s161 = sshll.u32 %s153, 4
          %s162 = int_to_ptr.vmem [resolvable:$true] %s161
          %167 = dma.hbm_to_vmem [thread:$0]  %s160, 256, %s162, %s150, 128, 128, 8
        $region28: #{tpu_custom_call.1} parent=23 // pred_fallthru
          _
      $region24: #{tpu_custom_call.1} parent=5 // pred_fallthru
        _
      %p168 = scmp.le.s32.totalorder 1, %s17
      %p169 = scmp.lt.s32.totalorder %s17, 3
      %p170 = pnand %p168, %p169
      %p171 = pneg %p170
      // Predicated region
      $region29: #{tpu_custom_call.1} parent=5 // pred_check
        _
      $region30: #{tpu_custom_call.1} parent=5 // pred_check_branch
        %173 = sbr.rel (%p170) target = $region32
      $region31: #{tpu_custom_call.1} parent=5 // pred_region
        %s174 = ssub.s32 %s17, 1
        // Predicated region
        $region33: #{tpu_custom_call.1} parent=31 // pred_check
          %p175 = pneg %p59
        $region34: #{tpu_custom_call.1} parent=31 // pred_check_branch
          %177 = sbr.rel (%p175) target = $region36
        $region35: #{tpu_custom_call.1} parent=31 // pred_region
          %178 = dma.done [#allocation4], 1792
        $region36: #{tpu_custom_call.1} parent=31 // pred_fallthru
          _
        %s179 = sand.u32 %s72, 1
        %s180 = scalar_lea.sflag [#allocation7], %s179
        %s181 = sand.u32 %s72, 1
        %s182 = smul.addr %s181, 16
        %s183 = scalar_lea.vmem [#allocation6], %s182
        // Predicated region
        $region37: #{tpu_custom_call.1} parent=31 // pred_check
          %p184 = pneg %p85
        $region38: #{tpu_custom_call.1} parent=31 // pred_check_branch
          %186 = sbr.rel (%p184) target = $region40
        $region39: #{tpu_custom_call.1} parent=31 // pred_region
          %187 = dma.done %s180, 256
        $region40: #{tpu_custom_call.1} parent=31 // pred_fallthru
          _
        %p188 = pneg %p38
        %p189 = pneg %p35
        %p190 = pneg %p59
        %p191 = pneg %p56
        %s192 = sand.u32 %s72, 1
        %s193 = scalar_lea.sflag [#allocation7], %s192
        %s194 = sand.u32 %s72, 1
        %s195 = smul.addr %s194, 16
        %s196 = scalar_lea.vmem [#allocation6], %s195
        %p197 = pneg %p85
        %p198 = pneg %p82
        %p199 = pneg %p111
        %p200 = pneg %p108
        %s201 = sand.u32 %s98, 1
        %s202 = scalar_lea.sflag [#allocation5], %s201
        %s203 = sand.u32 %s98, 1
        %s204 = smul.addr %s203, 16
        %s205 = scalar_lea.vmem [#allocation8], %s204
        %s206 = smul.u32 2, %s22
        %s207 = smul.u32 2, %s22
        %v208 = vld [vmem:[%s183] sm:$0xff]
        %v209 = vld [vmem:[%s183 + $0x8] sm:$0xff]
        %v210 = vmul.f32 %v208, %v208
        %v211 = vmul.f32 %v209, %v209
        %v214 = vcombine.high %v210, %v210
        %v215 = vcombine.high %v211, %v211
        %vm218 = vcmask 1043456
        %v219 = vsel %vm218, %v210, 0.0
        %v220 = vrot.slane %v219, 4
        %v221 = vadd.f32 %v219, %v220
        %v222 = vrot.slane %v221, 2
        %v223 = vadd.f32 %v221, %v222
        %v224 = vrot.slane %v223, 1
        %v225 = vadd.f32 %v223, %v224
        %v226 = vsel %vm218, %v214, 0.0
        %v227 = vrot.slane %v226, 4
        %v228 = vadd.f32 %v226, %v227
        %v229 = vrot.slane %v228, 2
        %v230 = vadd.f32 %v228, %v229
        %v231 = vrot.slane %v230, 1
        %v232 = vadd.f32 %v230, %v231
        %v233 = vsel %vm218, %v211, 0.0
        %v234 = vrot.slane %v233, 4
        %v235 = vadd.f32 %v233, %v234
        %v236 = vrot.slane %v235, 2
        %v237 = vadd.f32 %v235, %v236
        %v238 = vrot.slane %v237, 1
        %v239 = vadd.f32 %v237, %v238
        %v240 = vsel %vm218, %v215, 0.0
        %v241 = vrot.slane %v240, 4
        %v242 = vadd.f32 %v240, %v241
        %v243 = vrot.slane %v242, 2
        %v244 = vadd.f32 %v242, %v243
        %v245 = vrot.slane %v244, 1
        %v246 = vadd.f32 %v244, %v245
        %v247 = vadd.f32 %v225, 1e-05
        %v248 = vadd.f32 %v232, 1e-05
        %v249 = vadd.f32 %v239, 1e-05
        %v250 = vadd.f32 %v246, 1e-05
        %v251 = vrsqrt.pop %v247
        %v252 = vmul.f32 %v247, %v251
        %vm253 = vcmp.eq.f32.partialorder %v247, inf
        %v254 = vsel %vm253, %v247, %v252
        %vm255 = vcmp.eq.f32.partialorder %v247, 0.0
        %v256 = vand.u32 %v247, 2147483648
        %v257 = vsel %vm255, %v256, %v254
        %v258 = vrsqrt.pop %v248
        %v259 = vmul.f32 %v248, %v258
        %vm260 = vcmp.eq.f32.partialorder %v248, inf
        %v261 = vsel %vm260, %v248, %v259
        %vm262 = vcmp.eq.f32.partialorder %v248, 0.0
        %v263 = vand.u32 %v248, 2147483648
        %v264 = vsel %vm262, %v263, %v261
        %v265 = vrsqrt.pop %v249
        %v266 = vmul.f32 %v249, %v265
        %vm267 = vcmp.eq.f32.partialorder %v249, inf
        %v268 = vsel %vm267, %v249, %v266
        %vm269 = vcmp.eq.f32.partialorder %v249, 0.0
        %v270 = vand.u32 %v249, 2147483648
        %v271 = vsel %vm269, %v270, %v268
        %v272 = vrsqrt.pop %v250
        %v273 = vmul.f32 %v250, %v272
        %vm274 = vcmp.eq.f32.partialorder %v250, inf
        %v275 = vsel %vm274, %v250, %v273
        %vm276 = vcmp.eq.f32.partialorder %v250, 0.0
        %v277 = vand.u32 %v250, 2147483648
        %v278 = vsel %vm276, %v277, %v275
        %s279 = sld [smem:[#allocation2]]
        %v280 = vstv %s279
        %vm285 = vcmask 1041409
        %v286 = vsel %vm285, %v271, %v257
        %v287 = vsel %vm285, %v278, %v264
        %290 = vrot.lane.b32.xlu0 %v286, 51
        %v291 = vpop.permute.xlu0 %290
        %292 = vrot.lane.b32.xlu0 %v287, 51
        %v293 = vpop.permute.xlu0 %292
        %v294 = vlaneseq
        %v295 = vand.u32 %v294, 127
        %vm296 = vcmp.lt.s32.totalorder %v295, 51
        %v297 = vsel %vm296, %v291, %v293
        %v298 = vsel %vm296, %v293, %v291
        %v299 = vld [vmem:[#allocation3] ss:$8 sm:$0x3]
        %v301 = vlaneseq
        %v302 = vshrl.u32 %v301, 7
        %v303 = vsub.s32 0, %v302
        %v304 = vrot.slane %v299, %v303
        %v305 = vlaneseq
        %v306 = vshrl.u32 %v305, 7
        %v307 = vsub.s32 1, %v306
        %v308 = vrot.slane %v299, %v307
        %v311 = vmul.f32 %v298, %v304
        %v312 = vmul.f32 %v297, %v308
        %v313 = vadd.f32 %v280, %v311
        %v314 = vadd.f32 %v280, %v312
        %315 = vrot.lane.b32.xlu0 %v286, 50
        %v316 = vpop.permute.xlu0 %315
        %317 = vrot.lane.b32.xlu0 %v287, 50
        %v318 = vpop.permute.xlu0 %317
        %vm319 = vcmp.lt.s32.totalorder %v295, 50
        %v320 = vsel %vm319, %v316, %v318
        %v321 = vsel %vm319, %v318, %v316
        %s322 = scalar_lea.vmem [#allocation3], 1
        %v323 = vld [vmem:[%s322] ss:$8 sm:$0x3]
        %v325 = vlaneseq
        %v326 = vshrl.u32 %v325, 7
        %v327 = vsub.s32 0, %v326
        %v328 = vrot.slane %v323, %v327
        %v329 = vlaneseq
        %v330 = vshrl.u32 %v329, 7
        %v331 = vsub.s32 1, %v330
        %v332 = vrot.slane %v323, %v331
        %v335 = vmul.f32 %v321, %v328
        %v336 = vmul.f32 %v320, %v332
        %v337 = vadd.f32 %v313, %v335
        %v338 = vadd.f32 %v314, %v336
        %339 = vrot.lane.b32.xlu0 %v286, 49
        %v340 = vpop.permute.xlu0 %339
        %341 = vrot.lane.b32.xlu0 %v287, 49
        %v342 = vpop.permute.xlu0 %341
        %vm343 = vcmp.lt.s32.totalorder %v295, 49
        %v344 = vsel %vm343, %v340, %v342
        %v345 = vsel %vm343, %v342, %v340
        %s346 = scalar_lea.vmem [#allocation3], 2
        %v347 = vld [vmem:[%s346] ss:$8 sm:$0x3]
        %v349 = vlaneseq
        %v350 = vshrl.u32 %v349, 7
        %v351 = vsub.s32 0, %v350
        %v352 = vrot.slane %v347, %v351
        %v353 = vlaneseq
        %v354 = vshrl.u32 %v353, 7
        %v355 = vsub.s32 1, %v354
        %v356 = vrot.slane %v347, %v355
        %v359 = vmul.f32 %v345, %v352
        %v360 = vmul.f32 %v344, %v356
        %v361 = vadd.f32 %v337, %v359
        %v362 = vadd.f32 %v338, %v360
        %363 = vrot.lane.b32.xlu0 %v286, 48
        %v364 = vpop.permute.xlu0 %363
        %365 = vrot.lane.b32.xlu0 %v287, 48
        %v366 = vpop.permute.xlu0 %365
        %vm367 = vcmp.lt.s32.totalorder %v295, 48
        %v368 = vsel %vm367, %v364, %v366
        %v369 = vsel %vm367, %v366, %v364
        %s370 = scalar_lea.vmem [#allocation3], 3
        %v371 = vld [vmem:[%s370] ss:$8 sm:$0x3]
        %v373 = vlaneseq
        %v374 = vshrl.u32 %v373, 7
        %v375 = vsub.s32 0, %v374
        %v376 = vrot.slane %v371, %v375
        %v377 = vlaneseq
        %v378 = vshrl.u32 %v377, 7
        %v379 = vsub.s32 1, %v378
        %v380 = vrot.slane %v371, %v379
        %v383 = vmul.f32 %v369, %v376
        %v384 = vmul.f32 %v368, %v380
        %v385 = vadd.f32 %v361, %v383
        %v386 = vadd.f32 %v362, %v384
        %387 = vrot.lane.b32.xlu0 %v286, 47
        %v388 = vpop.permute.xlu0 %387
        %389 = vrot.lane.b32.xlu0 %v287, 47
        %v390 = vpop.permute.xlu0 %389
        %vm391 = vcmp.lt.s32.totalorder %v295, 47
        %v392 = vsel %vm391, %v388, %v390
        %v393 = vsel %vm391, %v390, %v388
        %s394 = scalar_lea.vmem [#allocation3], 4
        %v395 = vld [vmem:[%s394] ss:$8 sm:$0x3]
        %v397 = vlaneseq
        %v398 = vshrl.u32 %v397, 7
        %v399 = vsub.s32 0, %v398
        %v400 = vrot.slane %v395, %v399
        %v401 = vlaneseq
        %v402 = vshrl.u32 %v401, 7
        %v403 = vsub.s32 1, %v402
        %v404 = vrot.slane %v395, %v403
        %v407 = vmul.f32 %v393, %v400
        %v408 = vmul.f32 %v392, %v404
        %v409 = vadd.f32 %v385, %v407
        %v410 = vadd.f32 %v386, %v408
        %411 = vrot.lane.b32.xlu0 %v286, 46
        %v412 = vpop.permute.xlu0 %411
        %413 = vrot.lane.b32.xlu0 %v287, 46
        %v414 = vpop.permute.xlu0 %413
        %vm415 = vcmp.lt.s32.totalorder %v295, 46
        %v416 = vsel %vm415, %v412, %v414
        %v417 = vsel %vm415, %v414, %v412
        %s418 = scalar_lea.vmem [#allocation3], 5
        %v419 = vld [vmem:[%s418] ss:$8 sm:$0x3]
        %v421 = vlaneseq
        %v422 = vshrl.u32 %v421, 7
        %v423 = vsub.s32 0, %v422
        %v424 = vrot.slane %v419, %v423
        %v425 = vlaneseq
        %v426 = vshrl.u32 %v425, 7
        %v427 = vsub.s32 1, %v426
        %v428 = vrot.slane %v419, %v427
        %v431 = vmul.f32 %v417, %v424
        %v432 = vmul.f32 %v416, %v428
        %v433 = vadd.f32 %v409, %v431
        %v434 = vadd.f32 %v410, %v432
        %435 = vrot.lane.b32.xlu0 %v286, 45
        %v436 = vpop.permute.xlu0 %435
        %437 = vrot.lane.b32.xlu0 %v287, 45
        %v438 = vpop.permute.xlu0 %437
        %vm439 = vcmp.lt.s32.totalorder %v295, 45
        %v440 = vsel %vm439, %v436, %v438
        %v441 = vsel %vm439, %v438, %v436
        %s442 = scalar_lea.vmem [#allocation3], 6
        %v443 = vld [vmem:[%s442] ss:$8 sm:$0x3]
        %v445 = vlaneseq
        %v446 = vshrl.u32 %v445, 7
        %v447 = vsub.s32 0, %v446
        %v448 = vrot.slane %v443, %v447
        %v449 = vlaneseq
        %v450 = vshrl.u32 %v449, 7
        %v451 = vsub.s32 1, %v450
        %v452 = vrot.slane %v443, %v451
        %v455 = vmul.f32 %v441, %v448
        %v456 = vmul.f32 %v440, %v452
        %v457 = vadd.f32 %v433, %v455
        %v458 = vadd.f32 %v434, %v456
        %459 = vrot.lane.b32.xlu0 %v286, 35
        %v460 = vpop.permute.xlu0 %459
        %461 = vrot.lane.b32.xlu0 %v287, 35
        %v462 = vpop.permute.xlu0 %461
        %vm463 = vcmp.lt.s32.totalorder %v295, 35
        %v464 = vsel %vm463, %v460, %v462
        %v465 = vsel %vm463, %v462, %v460
        %s466 = scalar_lea.vmem [#allocation3], 7
        %v467 = vld [vmem:[%s466] ss:$8 sm:$0x3]
        %v469 = vlaneseq
        %v470 = vshrl.u32 %v469, 7
        %v471 = vsub.s32 0, %v470
        %v472 = vrot.slane %v467, %v471
        %v473 = vlaneseq
        %v474 = vshrl.u32 %v473, 7
        %v475 = vsub.s32 1, %v474
        %v476 = vrot.slane %v467, %v475
        %v479 = vmul.f32 %v465, %v472
        %v480 = vmul.f32 %v464, %v476
        %v481 = vadd.f32 %v457, %v479
        %v482 = vadd.f32 %v458, %v480
        %483 = vrot.lane.b32.xlu0 %v286, 34
        %v484 = vpop.permute.xlu0 %483
        %485 = vrot.lane.b32.xlu0 %v287, 34
        %v486 = vpop.permute.xlu0 %485
        %vm487 = vcmp.lt.s32.totalorder %v295, 34
        %v488 = vsel %vm487, %v484, %v486
        %v489 = vsel %vm487, %v486, %v484
        %s490 = scalar_lea.vmem [#allocation3], 16
        %v491 = vld [vmem:[%s490] ss:$8 sm:$0x3]
        %v493 = vlaneseq
        %v494 = vshrl.u32 %v493, 7
        %v495 = vsub.s32 0, %v494
        %v496 = vrot.slane %v491, %v495
        %v497 = vlaneseq
        %v498 = vshrl.u32 %v497, 7
        %v499 = vsub.s32 1, %v498
        %v500 = vrot.slane %v491, %v499
        %v503 = vmul.f32 %v489, %v496
        %v504 = vmul.f32 %v488, %v500
        %v505 = vadd.f32 %v481, %v503
        %v506 = vadd.f32 %v482, %v504
        %507 = vrot.lane.b32.xlu0 %v286, 33
        %v508 = vpop.permute.xlu0 %507
        %509 = vrot.lane.b32.xlu0 %v287, 33
        %v510 = vpop.permute.xlu0 %509
        %vm511 = vcmp.lt.s32.totalorder %v295, 33
        %v512 = vsel %vm511, %v508, %v510
        %v513 = vsel %vm511, %v510, %v508
        %s514 = scalar_lea.vmem [#allocation3], 17
        %v515 = vld [vmem:[%s514] ss:$8 sm:$0x3]
        %v517 = vlaneseq
        %v518 = vshrl.u32 %v517, 7
        %v519 = vsub.s32 0, %v518
        %v520 = vrot.slane %v515, %v519
        %v521 = vlaneseq
        %v522 = vshrl.u32 %v521, 7
        %v523 = vsub.s32 1, %v522
        %v524 = vrot.slane %v515, %v523
        %v527 = vmul.f32 %v513, %v520
        %v528 = vmul.f32 %v512, %v524
        %v529 = vadd.f32 %v505, %v527
        %v530 = vadd.f32 %v506, %v528
        %531 = vrot.lane.b32.xlu0 %v286, 32
        %v532 = vpop.permute.xlu0 %531
        %533 = vrot.lane.b32.xlu0 %v287, 32
        %v534 = vpop.permute.xlu0 %533
        %vm535 = vcmp.lt.s32.totalorder %v295, 32
        %v536 = vsel %vm535, %v532, %v534
        %v537 = vsel %vm535, %v534, %v532
        %s538 = scalar_lea.vmem [#allocation3], 18
        %v539 = vld [vmem:[%s538] ss:$8 sm:$0x3]
        %v541 = vlaneseq
        %v542 = vshrl.u32 %v541, 7
        %v543 = vsub.s32 0, %v542
        %v544 = vrot.slane %v539, %v543
        %v545 = vlaneseq
        %v546 = vshrl.u32 %v545, 7
        %v547 = vsub.s32 1, %v546
        %v548 = vrot.slane %v539, %v547
        %v551 = vmul.f32 %v537, %v544
        %v552 = vmul.f32 %v536, %v548
        %v553 = vadd.f32 %v529, %v551
        %v554 = vadd.f32 %v530, %v552
        %555 = vrot.lane.b32.xlu0 %v286, 31
        %v556 = vpop.permute.xlu0 %555
        %557 = vrot.lane.b32.xlu0 %v287, 31
        %v558 = vpop.permute.xlu0 %557
        %vm559 = vcmp.lt.s32.totalorder %v295, 31
        %v560 = vsel %vm559, %v556, %v558
        %v561 = vsel %vm559, %v558, %v556
        %s562 = scalar_lea.vmem [#allocation3], 19
        %v563 = vld [vmem:[%s562] ss:$8 sm:$0x3]
        %v565 = vlaneseq
        %v566 = vshrl.u32 %v565, 7
        %v567 = vsub.s32 0, %v566
        %v568 = vrot.slane %v563, %v567
        %v569 = vlaneseq
        %v570 = vshrl.u32 %v569, 7
        %v571 = vsub.s32 1, %v570
        %v572 = vrot.slane %v563, %v571
        %v575 = vmul.f32 %v561, %v568
        %v576 = vmul.f32 %v560, %v572
        %v577 = vadd.f32 %v553, %v575
        %v578 = vadd.f32 %v554, %v576
        %579 = vrot.lane.b32.xlu0 %v286, 30
        %v580 = vpop.permute.xlu0 %579
        %581 = vrot.lane.b32.xlu0 %v287, 30
        %v582 = vpop.permute.xlu0 %581
        %vm583 = vcmp.lt.s32.totalorder %v295, 30
        %v584 = vsel %vm583, %v580, %v582
        %v585 = vsel %vm583, %v582, %v580
        %s586 = scalar_lea.vmem [#allocation3], 20
        %v587 = vld [vmem:[%s586] ss:$8 sm:$0x3]
        %v589 = vlaneseq
        %v590 = vshrl.u32 %v589, 7
        %v591 = vsub.s32 0, %v590
        %v592 = vrot.slane %v587, %v591
        %v593 = vlaneseq
        %v594 = vshrl.u32 %v593, 7
        %v595 = vsub.s32 1, %v594
        %v596 = vrot.slane %v587, %v595
        %v599 = vmul.f32 %v585, %v592
        %v600 = vmul.f32 %v584, %v596
        %v601 = vadd.f32 %v577, %v599
        %v602 = vadd.f32 %v578, %v600
        %603 = vrot.lane.b32.xlu0 %v286, 29
        %v604 = vpop.permute.xlu0 %603
        %605 = vrot.lane.b32.xlu0 %v287, 29
        %v606 = vpop.permute.xlu0 %605
        %vm607 = vcmp.lt.s32.totalorder %v295, 29
        %v608 = vsel %vm607, %v604, %v606
        %v609 = vsel %vm607, %v606, %v604
        %s610 = scalar_lea.vmem [#allocation3], 21
        %v611 = vld [vmem:[%s610] ss:$8 sm:$0x3]
        %v613 = vlaneseq
        %v614 = vshrl.u32 %v613, 7
        %v615 = vsub.s32 0, %v614
        %v616 = vrot.slane %v611, %v615
        %v617 = vlaneseq
        %v618 = vshrl.u32 %v617, 7
        %v619 = vsub.s32 1, %v618
        %v620 = vrot.slane %v611, %v619
        %v623 = vmul.f32 %v609, %v616
        %v624 = vmul.f32 %v608, %v620
        %v625 = vadd.f32 %v601, %v623
        %v626 = vadd.f32 %v602, %v624
        %627 = vrot.lane.b32.xlu0 %v286, 19
        %v628 = vpop.permute.xlu0 %627
        %629 = vrot.lane.b32.xlu0 %v287, 19
        %v630 = vpop.permute.xlu0 %629
        %vm631 = vcmp.lt.s32.totalorder %v295, 19
        %v632 = vsel %vm631, %v628, %v630
        %v633 = vsel %vm631, %v630, %v628
        %s634 = scalar_lea.vmem [#allocation3], 22
        %v635 = vld [vmem:[%s634] ss:$8 sm:$0x3]
        %v637 = vlaneseq
        %v638 = vshrl.u32 %v637, 7
        %v639 = vsub.s32 0, %v638
        %v640 = vrot.slane %v635, %v639
        %v641 = vlaneseq
        %v642 = vshrl.u32 %v641, 7
        %v643 = vsub.s32 1, %v642
        %v644 = vrot.slane %v635, %v643
        %v647 = vmul.f32 %v633, %v640
        %v648 = vmul.f32 %v632, %v644
        %v649 = vadd.f32 %v625, %v647
        %v650 = vadd.f32 %v626, %v648
        %651 = vrot.lane.b32.xlu0 %v286, 18
        %v652 = vpop.permute.xlu0 %651
        %653 = vrot.lane.b32.xlu0 %v287, 18
        %v654 = vpop.permute.xlu0 %653
        %vm655 = vcmp.lt.s32.totalorder %v295, 18
        %v656 = vsel %vm655, %v652, %v654
        %v657 = vsel %vm655, %v654, %v652
        %s658 = scalar_lea.vmem [#allocation3], 23
        %v659 = vld [vmem:[%s658] ss:$8 sm:$0x3]
        %v661 = vlaneseq
        %v662 = vshrl.u32 %v661, 7
        %v663 = vsub.s32 0, %v662
        %v664 = vrot.slane %v659, %v663
        %v665 = vlaneseq
        %v666 = vshrl.u32 %v665, 7
        %v667 = vsub.s32 1, %v666
        %v668 = vrot.slane %v659, %v667
        %v671 = vmul.f32 %v657, %v664
        %v672 = vmul.f32 %v656, %v668
        %v673 = vadd.f32 %v649, %v671
        %v674 = vadd.f32 %v650, %v672
        %675 = vrot.lane.b32.xlu0 %v286, 17
        %v676 = vpop.permute.xlu0 %675
        %677 = vrot.lane.b32.xlu0 %v287, 17
        %v678 = vpop.permute.xlu0 %677
        %vm679 = vcmp.lt.s32.totalorder %v295, 17
        %v680 = vsel %vm679, %v676, %v678
        %v681 = vsel %vm679, %v678, %v676
        %s682 = scalar_lea.vmem [#allocation3], 32
        %v683 = vld [vmem:[%s682] ss:$8 sm:$0x3]
        %v685 = vlaneseq
        %v686 = vshrl.u32 %v685, 7
        %v687 = vsub.s32 0, %v686
        %v688 = vrot.slane %v683, %v687
        %v689 = vlaneseq
        %v690 = vshrl.u32 %v689, 7
        %v691 = vsub.s32 1, %v690
        %v692 = vrot.slane %v683, %v691
        %v695 = vmul.f32 %v681, %v688
        %v696 = vmul.f32 %v680, %v692
        %v697 = vadd.f32 %v673, %v695
        %v698 = vadd.f32 %v674, %v696
        %699 = vrot.lane.b32.xlu0 %v286, 16
        %v700 = vpop.permute.xlu0 %699
        %701 = vrot.lane.b32.xlu0 %v287, 16
        %v702 = vpop.permute.xlu0 %701
        %vm703 = vcmp.lt.s32.totalorder %v295, 16
        %v704 = vsel %vm703, %v700, %v702
        %v705 = vsel %vm703, %v702, %v700
        %s706 = scalar_lea.vmem [#allocation3], 33
        %v707 = vld [vmem:[%s706] ss:$8 sm:$0x3]
        %v709 = vlaneseq
        %v710 = vshrl.u32 %v709, 7
        %v711 = vsub.s32 0, %v710
        %v712 = vrot.slane %v707, %v711
        %v713 = vlaneseq
        %v714 = vshrl.u32 %v713, 7
        %v715 = vsub.s32 1, %v714
        %v716 = vrot.slane %v707, %v715
        %v719 = vmul.f32 %v705, %v712
        %v720 = vmul.f32 %v704, %v716
        %v721 = vadd.f32 %v697, %v719
        %v722 = vadd.f32 %v698, %v720
        %723 = vrot.lane.b32.xlu0 %v286, 15
        %v724 = vpop.permute.xlu0 %723
        %725 = vrot.lane.b32.xlu0 %v287, 15
        %v726 = vpop.permute.xlu0 %725
        %vm727 = vcmp.lt.s32.totalorder %v295, 15
        %v728 = vsel %vm727, %v724, %v726
        %v729 = vsel %vm727, %v726, %v724
        %s730 = scalar_lea.vmem [#allocation3], 34
        %v731 = vld [vmem:[%s730] ss:$8 sm:$0x3]
        %v733 = vlaneseq
        %v734 = vshrl.u32 %v733, 7
        %v735 = vsub.s32 0, %v734
        %v736 = vrot.slane %v731, %v735
        %v737 = vlaneseq
        %v738 = vshrl.u32 %v737, 7
        %v739 = vsub.s32 1, %v738
        %v740 = vrot.slane %v731, %v739
        %v743 = vmul.f32 %v729, %v736
        %v744 = vmul.f32 %v728, %v740
        %v745 = vadd.f32 %v721, %v743
        %v746 = vadd.f32 %v722, %v744
        %747 = vrot.lane.b32.xlu0 %v286, 14
        %v748 = vpop.permute.xlu0 %747
        %749 = vrot.lane.b32.xlu0 %v287, 14
        %v750 = vpop.permute.xlu0 %749
        %vm751 = vcmp.lt.s32.totalorder %v295, 14
        %v752 = vsel %vm751, %v748, %v750
        %v753 = vsel %vm751, %v750, %v748
        %s754 = scalar_lea.vmem [#allocation3], 35
        %v755 = vld [vmem:[%s754] ss:$8 sm:$0x3]
        %v757 = vlaneseq
        %v758 = vshrl.u32 %v757, 7
        %v759 = vsub.s32 0, %v758
        %v760 = vrot.slane %v755, %v759
        %v761 = vlaneseq
        %v762 = vshrl.u32 %v761, 7
        %v763 = vsub.s32 1, %v762
        %v764 = vrot.slane %v755, %v763
        %v767 = vmul.f32 %v753, %v760
        %v768 = vmul.f32 %v752, %v764
        %v769 = vadd.f32 %v745, %v767
        %v770 = vadd.f32 %v746, %v768
        %771 = vrot.lane.b32.xlu0 %v286, 13
        %v772 = vpop.permute.xlu0 %771
        %773 = vrot.lane.b32.xlu0 %v287, 13
        %v774 = vpop.permute.xlu0 %773
        %vm775 = vcmp.lt.s32.totalorder %v295, 13
        %v776 = vsel %vm775, %v772, %v774
        %v777 = vsel %vm775, %v774, %v772
        %s778 = scalar_lea.vmem [#allocation3], 36
        %v779 = vld [vmem:[%s778] ss:$8 sm:$0x3]
        %v781 = vlaneseq
        %v782 = vshrl.u32 %v781, 7
        %v783 = vsub.s32 0, %v782
        %v784 = vrot.slane %v779, %v783
        %v785 = vlaneseq
        %v786 = vshrl.u32 %v785, 7
        %v787 = vsub.s32 1, %v786
        %v788 = vrot.slane %v779, %v787
        %v791 = vmul.f32 %v777, %v784
        %v792 = vmul.f32 %v776, %v788
        %v793 = vadd.f32 %v769, %v791
        %v794 = vadd.f32 %v770, %v792
        %795 = vrot.lane.b32.xlu0 %v286, 3
        %v796 = vpop.permute.xlu0 %795
        %797 = vrot.lane.b32.xlu0 %v287, 3
        %v798 = vpop.permute.xlu0 %797
        %vm799 = vcmp.lt.s32.totalorder %v295, 3
        %v800 = vsel %vm799, %v796, %v798
        %v801 = vsel %vm799, %v798, %v796
        %s802 = scalar_lea.vmem [#allocation3], 37
        %v803 = vld [vmem:[%s802] ss:$8 sm:$0x3]
        %v805 = vlaneseq
        %v806 = vshrl.u32 %v805, 7
        %v807 = vsub.s32 0, %v806
        %v808 = vrot.slane %v803, %v807
        %v809 = vlaneseq
        %v810 = vshrl.u32 %v809, 7
        %v811 = vsub.s32 1, %v810
        %v812 = vrot.slane %v803, %v811
        %v815 = vmul.f32 %v801, %v808
        %v816 = vmul.f32 %v800, %v812
        %v817 = vadd.f32 %v793, %v815
        %v818 = vadd.f32 %v794, %v816
        %819 = vrot.lane.b32.xlu0 %v286, 2
        %v820 = vpop.permute.xlu0 %819
        %821 = vrot.lane.b32.xlu0 %v287, 2
        %v822 = vpop.permute.xlu0 %821
        %vm823 = vcmp.lt.s32.totalorder %v295, 2
        %v824 = vsel %vm823, %v820, %v822
        %v825 = vsel %vm823, %v822, %v820
        %s826 = scalar_lea.vmem [#allocation3], 38
        %v827 = vld [vmem:[%s826] ss:$8 sm:$0x3]
        %v829 = vlaneseq
        %v830 = vshrl.u32 %v829, 7
        %v831 = vsub.s32 0, %v830
        %v832 = vrot.slane %v827, %v831
        %v833 = vlaneseq
        %v834 = vshrl.u32 %v833, 7
        %v835 = vsub.s32 1, %v834
        %v836 = vrot.slane %v827, %v835
        %v839 = vmul.f32 %v825, %v832
        %v840 = vmul.f32 %v824, %v836
        %v841 = vadd.f32 %v817, %v839
        %v842 = vadd.f32 %v818, %v840
        %843 = vrot.lane.b32.xlu0 %v286, 1
        %v844 = vpop.permute.xlu0 %843
        %845 = vrot.lane.b32.xlu0 %v287, 1
        %v846 = vpop.permute.xlu0 %845
        %vm847 = vcmp.lt.s32.totalorder %v295, 1
        %v848 = vsel %vm847, %v844, %v846
        %v849 = vsel %vm847, %v846, %v844
        %s850 = scalar_lea.vmem [#allocation3], 39
        %v851 = vld [vmem:[%s850] ss:$8 sm:$0x3]
        %v853 = vlaneseq
        %v854 = vshrl.u32 %v853, 7
        %v855 = vsub.s32 0, %v854
        %v856 = vrot.slane %v851, %v855
        %v857 = vlaneseq
        %v858 = vshrl.u32 %v857, 7
        %v859 = vsub.s32 1, %v858
        %v860 = vrot.slane %v851, %v859
        %v863 = vmul.f32 %v849, %v856
        %v864 = vmul.f32 %v848, %v860
        %v865 = vadd.f32 %v841, %v863
        %v866 = vadd.f32 %v842, %v864
        %s867 = scalar_lea.vmem [#allocation3], 48
        %v868 = vld [vmem:[%s867] ss:$8 sm:$0x3]
        %v870 = vlaneseq
        %v871 = vshrl.u32 %v870, 7
        %v872 = vsub.s32 0, %v871
        %v873 = vrot.slane %v868, %v872
        %v874 = vlaneseq
        %v875 = vshrl.u32 %v874, 7
        %v876 = vsub.s32 1, %v875
        %v877 = vrot.slane %v868, %v876
        %v880 = vmul.f32 %v257, %v873
        %v881 = vmul.f32 %v264, %v877
        %v882 = vmul.f32 %v271, %v873
        %v883 = vmul.f32 %v278, %v877
        %v888 = vrot.slane %v882, 7
        %v889 = vsel %vm285, %v888, %v880
        %v890 = vrot.slane %v883, 7
        %v891 = vsel %vm285, %v890, %v881
        %v894 = vadd.f32 %v865, %v889
        %v895 = vadd.f32 %v866, %v891
        %896 = vrot.lane.b32.xlu0 %v286, 127
        %v897 = vpop.permute.xlu0 %896
        %898 = vrot.lane.b32.xlu0 %v287, 127
        %v899 = vpop.permute.xlu0 %898
        %vm900 = vcmp.lt.s32.totalorder %v295, 127
        %v901 = vsel %vm900, %v897, %v899
        %v902 = vsel %vm900, %v899, %v897
        %s903 = scalar_lea.vmem [#allocation3], 49
        %v904 = vld [vmem:[%s903] ss:$8 sm:$0x3]
        %v906 = vlaneseq
        %v907 = vshrl.u32 %v906, 7
        %v908 = vsub.s32 0, %v907
        %v909 = vrot.slane %v904, %v908
        %v910 = vlaneseq
        %v911 = vshrl.u32 %v910, 7
        %v912 = vsub.s32 1, %v911
        %v913 = vrot.slane %v904, %v912
        %v916 = vmul.f32 %v901, %v909
        %v917 = vmul.f32 %v902, %v913
        %v918 = vadd.f32 %v894, %v916
        %v919 = vadd.f32 %v895, %v917
        %920 = vrot.lane.b32.xlu0 %v286, 126
        %v921 = vpop.permute.xlu0 %920
        %922 = vrot.lane.b32.xlu0 %v287, 126
        %v923 = vpop.permute.xlu0 %922
        %vm924 = vcmp.lt.s32.totalorder %v295, 126
        %v925 = vsel %vm924, %v921, %v923
        %v926 = vsel %vm924, %v923, %v921
        %s927 = scalar_lea.vmem [#allocation3], 50
        %v928 = vld [vmem:[%s927] ss:$8 sm:$0x3]
        %v930 = vlaneseq
        %v931 = vshrl.u32 %v930, 7
        %v932 = vsub.s32 0, %v931
        %v933 = vrot.slane %v928, %v932
        %v934 = vlaneseq
        %v935 = vshrl.u32 %v934, 7
        %v936 = vsub.s32 1, %v935
        %v937 = vrot.slane %v928, %v936
        %v940 = vmul.f32 %v925, %v933
        %v941 = vmul.f32 %v926, %v937
        %v942 = vadd.f32 %v918, %v940
        %v943 = vadd.f32 %v919, %v941
        %944 = vrot.lane.b32.xlu0 %v286, 125
        %v945 = vpop.permute.xlu0 %944
        %946 = vrot.lane.b32.xlu0 %v287, 125
        %v947 = vpop.permute.xlu0 %946
        %vm948 = vcmp.lt.s32.totalorder %v295, 125
        %v949 = vsel %vm948, %v945, %v947
        %v950 = vsel %vm948, %v947, %v945
        %s951 = scalar_lea.vmem [#allocation3], 51
        %v952 = vld [vmem:[%s951] ss:$8 sm:$0x3]
        %v954 = vlaneseq
        %v955 = vshrl.u32 %v954, 7
        %v956 = vsub.s32 0, %v955
        %v957 = vrot.slane %v952, %v956
        %v958 = vlaneseq
        %v959 = vshrl.u32 %v958, 7
        %v960 = vsub.s32 1, %v959
        %v961 = vrot.slane %v952, %v960
        %v964 = vmul.f32 %v949, %v957
        %v965 = vmul.f32 %v950, %v961
        %v966 = vadd.f32 %v942, %v964
        %v967 = vadd.f32 %v943, %v965
        %968 = vrot.lane.b32.xlu0 %v286, 115
        %v969 = vpop.permute.xlu0 %968
        %970 = vrot.lane.b32.xlu0 %v287, 115
        %v971 = vpop.permute.xlu0 %970
        %vm972 = vcmp.lt.s32.totalorder %v295, 115
        %v973 = vsel %vm972, %v969, %v971
        %v974 = vsel %vm972, %v971, %v969
        %s975 = scalar_lea.vmem [#allocation3], 52
        %v976 = vld [vmem:[%s975] ss:$8 sm:$0x3]
        %v978 = vlaneseq
        %v979 = vshrl.u32 %v978, 7
        %v980 = vsub.s32 0, %v979
        %v981 = vrot.slane %v976, %v980
        %v982 = vlaneseq
        %v983 = vshrl.u32 %v982, 7
        %v984 = vsub.s32 1, %v983
        %v985 = vrot.slane %v976, %v984
        %v988 = vmul.f32 %v973, %v981
        %v989 = vmul.f32 %v974, %v985
        %v990 = vadd.f32 %v966, %v988
        %v991 = vadd.f32 %v967, %v989
        %992 = vrot.lane.b32.xlu0 %v286, 114
        %v993 = vpop.permute.xlu0 %992
        %994 = vrot.lane.b32.xlu0 %v287, 114
        %v995 = vpop.permute.xlu0 %994
        %vm996 = vcmp.lt.s32.totalorder %v295, 114
        %v997 = vsel %vm996, %v993, %v995
        %v998 = vsel %vm996, %v995, %v993
        %s999 = scalar_lea.vmem [#allocation3], 53
        %v1000 = vld [vmem:[%s999] ss:$8 sm:$0x3]
        %v1002 = vlaneseq
        %v1003 = vshrl.u32 %v1002, 7
        %v1004 = vsub.s32 0, %v1003
        %v1005 = vrot.slane %v1000, %v1004
        %v1006 = vlaneseq
        %v1007 = vshrl.u32 %v1006, 7
        %v1008 = vsub.s32 1, %v1007
        %v1009 = vrot.slane %v1000, %v1008
        %v1012 = vmul.f32 %v997, %v1005
        %v1013 = vmul.f32 %v998, %v1009
        %v1014 = vadd.f32 %v990, %v1012
        %v1015 = vadd.f32 %v991, %v1013
        %1016 = vrot.lane.b32.xlu0 %v286, 113
        %v1017 = vpop.permute.xlu0 %1016
        %1018 = vrot.lane.b32.xlu0 %v287, 113
        %v1019 = vpop.permute.xlu0 %1018
        %vm1020 = vcmp.lt.s32.totalorder %v295, 113
        %v1021 = vsel %vm1020, %v1017, %v1019
        %v1022 = vsel %vm1020, %v1019, %v1017
        %s1023 = scalar_lea.vmem [#allocation3], 54
        %v1024 = vld [vmem:[%s1023] ss:$8 sm:$0x3]
        %v1026 = vlaneseq
        %v1027 = vshrl.u32 %v1026, 7
        %v1028 = vsub.s32 0, %v1027
        %v1029 = vrot.slane %v1024, %v1028
        %v1030 = vlaneseq
        %v1031 = vshrl.u32 %v1030, 7
        %v1032 = vsub.s32 1, %v1031
        %v1033 = vrot.slane %v1024, %v1032
        %v1036 = vmul.f32 %v1021, %v1029
        %v1037 = vmul.f32 %v1022, %v1033
        %v1038 = vadd.f32 %v1014, %v1036
        %v1039 = vadd.f32 %v1015, %v1037
        %1040 = vrot.lane.b32.xlu0 %v286, 112
        %v1041 = vpop.permute.xlu0 %1040
        %1042 = vrot.lane.b32.xlu0 %v287, 112
        %v1043 = vpop.permute.xlu0 %1042
        %vm1044 = vcmp.lt.s32.totalorder %v295, 112
        %v1045 = vsel %vm1044, %v1041, %v1043
        %v1046 = vsel %vm1044, %v1043, %v1041
        %s1047 = scalar_lea.vmem [#allocation3], 55
        %v1048 = vld [vmem:[%s1047] ss:$8 sm:$0x3]
        %v1050 = vlaneseq
        %v1051 = vshrl.u32 %v1050, 7
        %v1052 = vsub.s32 0, %v1051
        %v1053 = vrot.slane %v1048, %v1052
        %v1054 = vlaneseq
        %v1055 = vshrl.u32 %v1054, 7
        %v1056 = vsub.s32 1, %v1055
        %v1057 = vrot.slane %v1048, %v1056
        %v1060 = vmul.f32 %v1045, %v1053
        %v1061 = vmul.f32 %v1046, %v1057
        %v1062 = vadd.f32 %v1038, %v1060
        %v1063 = vadd.f32 %v1039, %v1061
        %1064 = vrot.lane.b32.xlu0 %v286, 111
        %v1065 = vpop.permute.xlu0 %1064
        %1066 = vrot.lane.b32.xlu0 %v287, 111
        %v1067 = vpop.permute.xlu0 %1066
        %vm1068 = vcmp.lt.s32.totalorder %v295, 111
        %v1069 = vsel %vm1068, %v1065, %v1067
        %v1070 = vsel %vm1068, %v1067, %v1065
        %s1071 = scalar_lea.vmem [#allocation3], 64
        %v1072 = vld [vmem:[%s1071] ss:$8 sm:$0x3]
        %v1074 = vlaneseq
        %v1075 = vshrl.u32 %v1074, 7
        %v1076 = vsub.s32 0, %v1075
        %v1077 = vrot.slane %v1072, %v1076
        %v1078 = vlaneseq
        %v1079 = vshrl.u32 %v1078, 7
        %v1080 = vsub.s32 1, %v1079
        %v1081 = vrot.slane %v1072, %v1080
        %v1084 = vmul.f32 %v1069, %v1077
        %v1085 = vmul.f32 %v1070, %v1081
        %v1086 = vadd.f32 %v1062, %v1084
        %v1087 = vadd.f32 %v1063, %v1085
        %1088 = vrot.lane.b32.xlu0 %v286, 110
        %v1089 = vpop.permute.xlu0 %1088
        %1090 = vrot.lane.b32.xlu0 %v287, 110
        %v1091 = vpop.permute.xlu0 %1090
        %vm1092 = vcmp.lt.s32.totalorder %v295, 110
        %v1093 = vsel %vm1092, %v1089, %v1091
        %v1094 = vsel %vm1092, %v1091, %v1089
        %s1095 = scalar_lea.vmem [#allocation3], 65
        %v1096 = vld [vmem:[%s1095] ss:$8 sm:$0x3]
        %v1098 = vlaneseq
        %v1099 = vshrl.u32 %v1098, 7
        %v1100 = vsub.s32 0, %v1099
        %v1101 = vrot.slane %v1096, %v1100
        %v1102 = vlaneseq
        %v1103 = vshrl.u32 %v1102, 7
        %v1104 = vsub.s32 1, %v1103
        %v1105 = vrot.slane %v1096, %v1104
        %v1108 = vmul.f32 %v1093, %v1101
        %v1109 = vmul.f32 %v1094, %v1105
        %v1110 = vadd.f32 %v1086, %v1108
        %v1111 = vadd.f32 %v1087, %v1109
        %1112 = vrot.lane.b32.xlu0 %v286, 109
        %v1113 = vpop.permute.xlu0 %1112
        %1114 = vrot.lane.b32.xlu0 %v287, 109
        %v1115 = vpop.permute.xlu0 %1114
        %vm1116 = vcmp.lt.s32.totalorder %v295, 109
        %v1117 = vsel %vm1116, %v1113, %v1115
        %v1118 = vsel %vm1116, %v1115, %v1113
        %s1119 = scalar_lea.vmem [#allocation3], 66
        %v1120 = vld [vmem:[%s1119] ss:$8 sm:$0x3]
        %v1122 = vlaneseq
        %v1123 = vshrl.u32 %v1122, 7
        %v1124 = vsub.s32 0, %v1123
        %v1125 = vrot.slane %v1120, %v1124
        %v1126 = vlaneseq
        %v1127 = vshrl.u32 %v1126, 7
        %v1128 = vsub.s32 1, %v1127
        %v1129 = vrot.slane %v1120, %v1128
        %v1132 = vmul.f32 %v1117, %v1125
        %v1133 = vmul.f32 %v1118, %v1129
        %v1134 = vadd.f32 %v1110, %v1132
        %v1135 = vadd.f32 %v1111, %v1133
        %1136 = vrot.lane.b32.xlu0 %v286, 99
        %v1137 = vpop.permute.xlu0 %1136
        %1138 = vrot.lane.b32.xlu0 %v287, 99
        %v1139 = vpop.permute.xlu0 %1138
        %vm1140 = vcmp.lt.s32.totalorder %v295, 99
        %v1141 = vsel %vm1140, %v1137, %v1139
        %v1142 = vsel %vm1140, %v1139, %v1137
        %s1143 = scalar_lea.vmem [#allocation3], 67
        %v1144 = vld [vmem:[%s1143] ss:$8 sm:$0x3]
        %v1146 = vlaneseq
        %v1147 = vshrl.u32 %v1146, 7
        %v1148 = vsub.s32 0, %v1147
        %v1149 = vrot.slane %v1144, %v1148
        %v1150 = vlaneseq
        %v1151 = vshrl.u32 %v1150, 7
        %v1152 = vsub.s32 1, %v1151
        %v1153 = vrot.slane %v1144, %v1152
        %v1156 = vmul.f32 %v1141, %v1149
        %v1157 = vmul.f32 %v1142, %v1153
        %v1158 = vadd.f32 %v1134, %v1156
        %v1159 = vadd.f32 %v1135, %v1157
        %1160 = vrot.lane.b32.xlu0 %v286, 98
        %v1161 = vpop.permute.xlu0 %1160
        %1162 = vrot.lane.b32.xlu0 %v287, 98
        %v1163 = vpop.permute.xlu0 %1162
        %vm1164 = vcmp.lt.s32.totalorder %v295, 98
        %v1165 = vsel %vm1164, %v1161, %v1163
        %v1166 = vsel %vm1164, %v1163, %v1161
        %s1167 = scalar_lea.vmem [#allocation3], 68
        %v1168 = vld [vmem:[%s1167] ss:$8 sm:$0x3]
        %v1170 = vlaneseq
        %v1171 = vshrl.u32 %v1170, 7
        %v1172 = vsub.s32 0, %v1171
        %v1173 = vrot.slane %v1168, %v1172
        %v1174 = vlaneseq
        %v1175 = vshrl.u32 %v1174, 7
        %v1176 = vsub.s32 1, %v1175
        %v1177 = vrot.slane %v1168, %v1176
        %v1180 = vmul.f32 %v1165, %v1173
        %v1181 = vmul.f32 %v1166, %v1177
        %v1182 = vadd.f32 %v1158, %v1180
        %v1183 = vadd.f32 %v1159, %v1181
        %1184 = vrot.lane.b32.xlu0 %v286, 97
        %v1185 = vpop.permute.xlu0 %1184
        %1186 = vrot.lane.b32.xlu0 %v287, 97
        %v1187 = vpop.permute.xlu0 %1186
        %vm1188 = vcmp.lt.s32.totalorder %v295, 97
        %v1189 = vsel %vm1188, %v1185, %v1187
        %v1190 = vsel %vm1188, %v1187, %v1185
        %s1191 = scalar_lea.vmem [#allocation3], 69
        %v1192 = vld [vmem:[%s1191] ss:$8 sm:$0x3]
        %v1194 = vlaneseq
        %v1195 = vshrl.u32 %v1194, 7
        %v1196 = vsub.s32 0, %v1195
        %v1197 = vrot.slane %v1192, %v1196
        %v1198 = vlaneseq
        %v1199 = vshrl.u32 %v1198, 7
        %v1200 = vsub.s32 1, %v1199
        %v1201 = vrot.slane %v1192, %v1200
        %v1204 = vmul.f32 %v1189, %v1197
        %v1205 = vmul.f32 %v1190, %v1201
        %v1206 = vadd.f32 %v1182, %v1204
        %v1207 = vadd.f32 %v1183, %v1205
        %1208 = vrot.lane.b32.xlu0 %v286, 96
        %v1209 = vpop.permute.xlu0 %1208
        %1210 = vrot.lane.b32.xlu0 %v287, 96
        %v1211 = vpop.permute.xlu0 %1210
        %vm1212 = vcmp.lt.s32.totalorder %v295, 96
        %v1213 = vsel %vm1212, %v1209, %v1211
        %v1214 = vsel %vm1212, %v1211, %v1209
        %s1215 = scalar_lea.vmem [#allocation3], 70
        %v1216 = vld [vmem:[%s1215] ss:$8 sm:$0x3]
        %v1218 = vlaneseq
        %v1219 = vshrl.u32 %v1218, 7
        %v1220 = vsub.s32 0, %v1219
        %v1221 = vrot.slane %v1216, %v1220
        %v1222 = vlaneseq
        %v1223 = vshrl.u32 %v1222, 7
        %v1224 = vsub.s32 1, %v1223
        %v1225 = vrot.slane %v1216, %v1224
        %v1228 = vmul.f32 %v1213, %v1221
        %v1229 = vmul.f32 %v1214, %v1225
        %v1230 = vadd.f32 %v1206, %v1228
        %v1231 = vadd.f32 %v1207, %v1229
        %1232 = vrot.lane.b32.xlu0 %v286, 95
        %v1233 = vpop.permute.xlu0 %1232
        %1234 = vrot.lane.b32.xlu0 %v287, 95
        %v1235 = vpop.permute.xlu0 %1234
        %vm1236 = vcmp.lt.s32.totalorder %v295, 95
        %v1237 = vsel %vm1236, %v1233, %v1235
        %v1238 = vsel %vm1236, %v1235, %v1233
        %s1239 = scalar_lea.vmem [#allocation3], 71
        %v1240 = vld [vmem:[%s1239] ss:$8 sm:$0x3]
        %v1242 = vlaneseq
        %v1243 = vshrl.u32 %v1242, 7
        %v1244 = vsub.s32 0, %v1243
        %v1245 = vrot.slane %v1240, %v1244
        %v1246 = vlaneseq
        %v1247 = vshrl.u32 %v1246, 7
        %v1248 = vsub.s32 1, %v1247
        %v1249 = vrot.slane %v1240, %v1248
        %v1252 = vmul.f32 %v1237, %v1245
        %v1253 = vmul.f32 %v1238, %v1249
        %v1254 = vadd.f32 %v1230, %v1252
        %v1255 = vadd.f32 %v1231, %v1253
        %1256 = vrot.lane.b32.xlu0 %v286, 94
        %v1257 = vpop.permute.xlu0 %1256
        %1258 = vrot.lane.b32.xlu0 %v287, 94
        %v1259 = vpop.permute.xlu0 %1258
        %vm1260 = vcmp.lt.s32.totalorder %v295, 94
        %v1261 = vsel %vm1260, %v1257, %v1259
        %v1262 = vsel %vm1260, %v1259, %v1257
        %s1263 = scalar_lea.vmem [#allocation3], 80
        %v1264 = vld [vmem:[%s1263] ss:$8 sm:$0x3]
        %v1266 = vlaneseq
        %v1267 = vshrl.u32 %v1266, 7
        %v1268 = vsub.s32 0, %v1267
        %v1269 = vrot.slane %v1264, %v1268
        %v1270 = vlaneseq
        %v1271 = vshrl.u32 %v1270, 7
        %v1272 = vsub.s32 1, %v1271
        %v1273 = vrot.slane %v1264, %v1272
        %v1276 = vmul.f32 %v1261, %v1269
        %v1277 = vmul.f32 %v1262, %v1273
        %v1278 = vadd.f32 %v1254, %v1276
        %v1279 = vadd.f32 %v1255, %v1277
        %1280 = vrot.lane.b32.xlu0 %v286, 93
        %v1281 = vpop.permute.xlu0 %1280
        %1282 = vrot.lane.b32.xlu0 %v287, 93
        %v1283 = vpop.permute.xlu0 %1282
        %vm1284 = vcmp.lt.s32.totalorder %v295, 93
        %v1285 = vsel %vm1284, %v1281, %v1283
        %v1286 = vsel %vm1284, %v1283, %v1281
        %s1287 = scalar_lea.vmem [#allocation3], 81
        %v1288 = vld [vmem:[%s1287] ss:$8 sm:$0x3]
        %v1290 = vlaneseq
        %v1291 = vshrl.u32 %v1290, 7
        %v1292 = vsub.s32 0, %v1291
        %v1293 = vrot.slane %v1288, %v1292
        %v1294 = vlaneseq
        %v1295 = vshrl.u32 %v1294, 7
        %v1296 = vsub.s32 1, %v1295
        %v1297 = vrot.slane %v1288, %v1296
        %v1300 = vmul.f32 %v1285, %v1293
        %v1301 = vmul.f32 %v1286, %v1297
        %v1302 = vadd.f32 %v1278, %v1300
        %v1303 = vadd.f32 %v1279, %v1301
        %1304 = vrot.lane.b32.xlu0 %v286, 83
        %v1305 = vpop.permute.xlu0 %1304
        %1306 = vrot.lane.b32.xlu0 %v287, 83
        %v1307 = vpop.permute.xlu0 %1306
        %vm1308 = vcmp.lt.s32.totalorder %v295, 83
        %v1309 = vsel %vm1308, %v1305, %v1307
        %v1310 = vsel %vm1308, %v1307, %v1305
        %s1311 = scalar_lea.vmem [#allocation3], 82
        %v1312 = vld [vmem:[%s1311] ss:$8 sm:$0x3]
        %v1314 = vlaneseq
        %v1315 = vshrl.u32 %v1314, 7
        %v1316 = vsub.s32 0, %v1315
        %v1317 = vrot.slane %v1312, %v1316
        %v1318 = vlaneseq
        %v1319 = vshrl.u32 %v1318, 7
        %v1320 = vsub.s32 1, %v1319
        %v1321 = vrot.slane %v1312, %v1320
        %v1324 = vmul.f32 %v1309, %v1317
        %v1325 = vmul.f32 %v1310, %v1321
        %v1326 = vadd.f32 %v1302, %v1324
        %v1327 = vadd.f32 %v1303, %v1325
        %1328 = vrot.lane.b32.xlu0 %v286, 82
        %v1329 = vpop.permute.xlu0 %1328
        %1330 = vrot.lane.b32.xlu0 %v287, 82
        %v1331 = vpop.permute.xlu0 %1330
        %vm1332 = vcmp.lt.s32.totalorder %v295, 82
        %v1333 = vsel %vm1332, %v1329, %v1331
        %v1334 = vsel %vm1332, %v1331, %v1329
        %s1335 = scalar_lea.vmem [#allocation3], 83
        %v1336 = vld [vmem:[%s1335] ss:$8 sm:$0x3]
        %v1338 = vlaneseq
        %v1339 = vshrl.u32 %v1338, 7
        %v1340 = vsub.s32 0, %v1339
        %v1341 = vrot.slane %v1336, %v1340
        %v1342 = vlaneseq
        %v1343 = vshrl.u32 %v1342, 7
        %v1344 = vsub.s32 1, %v1343
        %v1345 = vrot.slane %v1336, %v1344
        %v1348 = vmul.f32 %v1333, %v1341
        %v1349 = vmul.f32 %v1334, %v1345
        %v1350 = vadd.f32 %v1326, %v1348
        %v1351 = vadd.f32 %v1327, %v1349
        %1352 = vrot.lane.b32.xlu0 %v286, 81
        %v1353 = vpop.permute.xlu0 %1352
        %1354 = vrot.lane.b32.xlu0 %v287, 81
        %v1355 = vpop.permute.xlu0 %1354
        %vm1356 = vcmp.lt.s32.totalorder %v295, 81
        %v1357 = vsel %vm1356, %v1353, %v1355
        %v1358 = vsel %vm1356, %v1355, %v1353
        %s1359 = scalar_lea.vmem [#allocation3], 84
        %v1360 = vld [vmem:[%s1359] ss:$8 sm:$0x3]
        %v1362 = vlaneseq
        %v1363 = vshrl.u32 %v1362, 7
        %v1364 = vsub.s32 0, %v1363
        %v1365 = vrot.slane %v1360, %v1364
        %v1366 = vlaneseq
        %v1367 = vshrl.u32 %v1366, 7
        %v1368 = vsub.s32 1, %v1367
        %v1369 = vrot.slane %v1360, %v1368
        %v1372 = vmul.f32 %v1357, %v1365
        %v1373 = vmul.f32 %v1358, %v1369
        %v1374 = vadd.f32 %v1350, %v1372
        %v1375 = vadd.f32 %v1351, %v1373
        %1376 = vrot.lane.b32.xlu0 %v286, 80
        %v1377 = vpop.permute.xlu0 %1376
        %1378 = vrot.lane.b32.xlu0 %v287, 80
        %v1379 = vpop.permute.xlu0 %1378
        %vm1380 = vcmp.lt.s32.totalorder %v295, 80
        %v1381 = vsel %vm1380, %v1377, %v1379
        %v1382 = vsel %vm1380, %v1379, %v1377
        %s1383 = scalar_lea.vmem [#allocation3], 85
        %v1384 = vld [vmem:[%s1383] ss:$8 sm:$0x3]
        %v1386 = vlaneseq
        %v1387 = vshrl.u32 %v1386, 7
        %v1388 = vsub.s32 0, %v1387
        %v1389 = vrot.slane %v1384, %v1388
        %v1390 = vlaneseq
        %v1391 = vshrl.u32 %v1390, 7
        %v1392 = vsub.s32 1, %v1391
        %v1393 = vrot.slane %v1384, %v1392
        %v1396 = vmul.f32 %v1381, %v1389
        %v1397 = vmul.f32 %v1382, %v1393
        %v1398 = vadd.f32 %v1374, %v1396
        %v1399 = vadd.f32 %v1375, %v1397
        %1400 = vrot.lane.b32.xlu0 %v286, 79
        %v1401 = vpop.permute.xlu0 %1400
        %1402 = vrot.lane.b32.xlu0 %v287, 79
        %v1403 = vpop.permute.xlu0 %1402
        %vm1404 = vcmp.lt.s32.totalorder %v295, 79
        %v1405 = vsel %vm1404, %v1401, %v1403
        %v1406 = vsel %vm1404, %v1403, %v1401
        %s1407 = scalar_lea.vmem [#allocation3], 86
        %v1408 = vld [vmem:[%s1407] ss:$8 sm:$0x3]
        %v1410 = vlaneseq
        %v1411 = vshrl.u32 %v1410, 7
        %v1412 = vsub.s32 0, %v1411
        %v1413 = vrot.slane %v1408, %v1412
        %v1414 = vlaneseq
        %v1415 = vshrl.u32 %v1414, 7
        %v1416 = vsub.s32 1, %v1415
        %v1417 = vrot.slane %v1408, %v1416
        %v1420 = vmul.f32 %v1405, %v1413
        %v1421 = vmul.f32 %v1406, %v1417
        %v1422 = vadd.f32 %v1398, %v1420
        %v1423 = vadd.f32 %v1399, %v1421
        %1424 = vrot.lane.b32.xlu0 %v286, 78
        %v1425 = vpop.permute.xlu0 %1424
        %1426 = vrot.lane.b32.xlu0 %v287, 78
        %v1427 = vpop.permute.xlu0 %1426
        %vm1428 = vcmp.lt.s32.totalorder %v295, 78
        %v1429 = vsel %vm1428, %v1425, %v1427
        %v1430 = vsel %vm1428, %v1427, %v1425
        %s1431 = scalar_lea.vmem [#allocation3], 87
        %v1432 = vld [vmem:[%s1431] ss:$8 sm:$0x3]
        %v1434 = vlaneseq
        %v1435 = vshrl.u32 %v1434, 7
        %v1436 = vsub.s32 0, %v1435
        %v1437 = vrot.slane %v1432, %v1436
        %v1438 = vlaneseq
        %v1439 = vshrl.u32 %v1438, 7
        %v1440 = vsub.s32 1, %v1439
        %v1441 = vrot.slane %v1432, %v1440
        %v1444 = vmul.f32 %v1429, %v1437
        %v1445 = vmul.f32 %v1430, %v1441
        %v1446 = vadd.f32 %v1422, %v1444
        %v1447 = vadd.f32 %v1423, %v1445
        %1448 = vrot.lane.b32.xlu0 %v286, 77
        %v1449 = vpop.permute.xlu0 %1448
        %1450 = vrot.lane.b32.xlu0 %v287, 77
        %v1451 = vpop.permute.xlu0 %1450
        %vm1452 = vcmp.lt.s32.totalorder %v295, 77
        %v1453 = vsel %vm1452, %v1449, %v1451
        %v1454 = vsel %vm1452, %v1451, %v1449
        %s1455 = scalar_lea.vmem [#allocation3], 96
        %v1456 = vld [vmem:[%s1455] ss:$8 sm:$0x3]
        %v1458 = vlaneseq
        %v1459 = vshrl.u32 %v1458, 7
        %v1460 = vsub.s32 0, %v1459
        %v1461 = vrot.slane %v1456, %v1460
        %v1462 = vlaneseq
        %v1463 = vshrl.u32 %v1462, 7
        %v1464 = vsub.s32 1, %v1463
        %v1465 = vrot.slane %v1456, %v1464
        %v1468 = vmul.f32 %v1453, %v1461
        %v1469 = vmul.f32 %v1454, %v1465
        %v1470 = vadd.f32 %v1446, %v1468
        %v1471 = vadd.f32 %v1447, %v1469
        %v1472 = vxor.u32 %v1470, 2147483648
        %v1473 = vxor.u32 %v1471, 2147483648
        %v1474 = vmul.f32 %v1472, 1.442695
        %v1475 = vpow.pop %v1474
        %v1476 = vmul.f32 %v1473, 1.442695
        %v1477 = vpow.pop %v1476
        %v1478 = vadd.f32 %v1475, 1.0
        %v1479 = vadd.f32 %v1477, 1.0
        %v1480 = vrcp.pop %v1478
        %v1481 = vmul.f32 1.0, %v1480
        %v1482 = vrcp.pop %v1479
        %v1483 = vmul.f32 1.0, %v1482
        %v1486 = vcombine.low %v1481, %v1483
        %v1488 = vunpack.c.l.s4 1966171168
        %v1489 = vunpack.c.0.s8 %v1488
        %v1490 = vlaneseq
        %v1491 = vshrl.u32 %v1490, 7
        %v1492 = vsub.s32 %v1489, %v1491
        %v1493 = vrot.slane %v1486, %v1492
        %v1494 = vcombine.high %v1493, %v1493
        %v1496 = vunpack.c.l.s4 1966171168
        %v1497 = vunpack.c.0.s8 %v1496
        %v1498 = vlaneseq
        %v1499 = vshrl.u32 %v1498, 7
        %v1500 = vsub.s32 %v1497, %v1499
        %v1501 = vrot.slane %v1493, %v1500
        %v1503 = vunpack.c.l.s4 1966171168
        %v1504 = vunpack.c.0.s8 %v1503
        %v1505 = vlaneseq
        %v1506 = vshrl.u32 %v1505, 7
        %v1507 = vsub.s32 %v1504, %v1506
        %v1508 = vrot.slane %v1494, %v1507
        %v1509 = vlaneseq
        %v1510 = vshrl.u32 %v1509, 7
        %v1511 = vsub.s32 0, %v1510
        %v1512 = vrot.slane %v1501, %v1511
        %v1513 = vlaneseq
        %v1514 = vshrl.u32 %v1513, 7
        %v1515 = vsub.s32 1, %v1514
        %v1516 = vrot.slane %v1501, %v1515
        %v1517 = vlaneseq
        %v1518 = vshrl.u32 %v1517, 7
        %v1519 = vsub.s32 0, %v1518
        %v1520 = vrot.slane %v1508, %v1519
        %v1521 = vlaneseq
        %v1522 = vshrl.u32 %v1521, 7
        %v1523 = vsub.s32 1, %v1522
        %v1524 = vrot.slane %v1508, %v1523
        %v1525 = vcombine.low %v1512, %v1516
        %v1526 = vcombine.low %v1520, %v1524
        %v1529 = vmul.f32 %v208, %v1525
        %v1530 = vmul.f32 %v209, %v1526
        %1531 = vst [vmem:[%s205] sm:$0xff] %v1529
        %1532 = vst [vmem:[%s205 + $0x8] sm:$0xff] %v1530
        %s1533 = sand.u32 %s98, 1
        %s1534 = scalar_lea.sflag [#allocation5], %s1533
        %s1535 = sand.u32 %s98, 1
        %s1536 = smul.addr %s1535, 16
        %s1537 = scalar_lea.vmem [#allocation8], %s1536
        // Predicated region
        $region41: #{tpu_custom_call.1} parent=31 // pred_check
          %p1538 = pneg %p108
        $region42: #{tpu_custom_call.1} parent=31 // pred_check_branch
          %1540 = sbr.rel (%p1538) target = $region44
        $region43: #{tpu_custom_call.1} parent=31 // pred_region
          %s1541 = smul.u32 2, %s22
          %s1543 = ssub.s32 256, 256
          %1544 = vsyncadd %s1534, %s1543
          %s1545 = smul.addr %s1541, 2
          %s1546 = smul.addr %s1545, 64
          %s1547 = scalar_lea.hbm %s3, %s1546
          %s1548 = sshll.u32 %s1537, 4
          %s1549 = int_to_ptr.vmem [resolvable:$true] %s1548
          %1554 = dma.vmem_to_hbm [thread:$0]  %s1549, 256, %s1547, %s1534, 128, 128, 8
        $region44: #{tpu_custom_call.1} parent=31 // pred_fallthru
          _
      $region32: #{tpu_custom_call.1} parent=5 // pred_fallthru
        _
      %p1555 = scmp.le.s32.totalorder 2, %s17
      // Predicated region
      $region45: #{tpu_custom_call.1} parent=5 // pred_check
        %p1556 = pneg %p1555
      $region46: #{tpu_custom_call.1} parent=5 // pred_check_branch
        %1558 = sbr.rel (%p1556) target = $region48
      $region47: #{tpu_custom_call.1} parent=5 // pred_region
        %s1559 = ssub.s32 %s17, 2
        // Predicated region
        $region49: #{tpu_custom_call.1} parent=47 // pred_check
          %p1560 = pneg %p114
        $region50: #{tpu_custom_call.1} parent=47 // pred_check_branch
          %1562 = sbr.rel (%p1560) target = $region52
        $region51: #{tpu_custom_call.1} parent=47 // pred_region
          %s1563 = sand.u32 %s99, 1
          %s1564 = scalar_lea.sflag [#allocation5], %s1563
          %s1565 = sand.u32 %s99, 1
          %s1566 = smul.addr %s1565, 16
          %s1567 = scalar_lea.vmem [#allocation8], %s1566
          %1568 = dma.done %s1564, 256
        $region52: #{tpu_custom_call.1} parent=47 // pred_fallthru
          _
      $region48: #{tpu_custom_call.1} parent=5 // pred_fallthru
        _
    $region6: #{tpu_custom_call.1} parent=1 // loop_footer
      %s21 = sadd.s32 1, %s17
    $region7: #{tpu_custom_call.1} parent=1 // loop_footer_branch
      %16 = sbr.rel target = $region3
    $region8: #{tpu_custom_call.1} parent=1 // loop_exit
      _
    %1569 = vsyncpa [#allocation4], 1
    %s1570 = scalar_lea.sflag [#allocation4], 1
    %1571 = vsyncpa %s1570, 1
    %1572 = vsyncpa [#allocation7], 1
    %s1573 = scalar_lea.sflag [#allocation7], 1
    %1574 = vsyncpa %s1573, 1
    %1575 = vsyncpa [#allocation5], 1
    %s1576 = scalar_lea.sflag [#allocation5], 1
    %1577 = vsyncpa %s1576, 1

</llo_original>
